<compile_context>
chip_gen: v7x
topology: tpu7x:2x2x1
jax: 0.10.0
libtpu: 0.0.40
codegen_flags: <defaults>
</compile_context>

<pallas_src>
import functools

import jax
import jax.numpy as jnp
from jax import lax
from jax.experimental import pallas as pl
from jax.experimental.pallas import tpu as pltpu

n_embd = 64


# ----------------------------------------------------------------------------
# Fused kernel: single invocation does QKV, all batches/heads, projection+bias.
# ----------------------------------------------------------------------------
def _mha_fused_kernel(x_ref, wqkv_ref, wproj_ref, bproj_ref, o_ref, *,
                      batch, seq_len, num_heads):
    # x_ref: (B*T, C) f32   wqkv_ref: (C, 3C) bf16 (Q section pre-scaled)
    # wproj_ref: (C, C) bf16   bproj_ref: (1, C) f32   o_ref: (B*T, C) f32
    BT, C = x_ref.shape
    T = seq_len
    hs = C // num_heads

    # One wide MXU push for Q, K, V of all heads and all batch rows.
    x_bf = x_ref[...].astype(jnp.bfloat16)
    qkv = jnp.dot(x_bf, wqkv_ref[...],
                  preferred_element_type=jnp.float32)          # (B*T, 3C) f32

    wproj = wproj_ref[...]                                      # (C, C) bf16
    bias = bproj_ref[...].astype(jnp.float32)                   # (1, C)

    # Causal mask — built once, reused by every (batch, head) block.
    row = lax.broadcasted_iota(jnp.int32, (T, T), 0)
    col = lax.broadcasted_iota(jnp.int32, (T, T), 1)
    causal = row >= col
    neg = jnp.float32(-1e30)   # large finite negative: NaN-safe vs -inf padding

    for b in range(batch):                                      # static unroll
        r0 = b * T
        y_b = jnp.zeros((T, C), dtype=jnp.float32)
        for h in range(num_heads):                              # static unroll
            c0 = h * hs
            qh = qkv[r0:r0 + T, 0 * C + c0:0 * C + c0 + hs].astype(jnp.bfloat16)
            kh = qkv[r0:r0 + T, 1 * C + c0:1 * C + c0 + hs].astype(jnp.bfloat16)
            vh = qkv[r0:r0 + T, 2 * C + c0:2 * C + c0 + hs].astype(jnp.bfloat16)

            # q @ k^T (scale already folded into the Q weights).
            sc = lax.dot_general(qh, kh, (((1,), (1,)), ((), ())),
                                 preferred_element_type=jnp.float32)   # (T, T)
            sc = jnp.where(causal, sc, neg)

            # softmax in f32 (diagonal always unmasked -> no all-masked rows).
            sc = sc - jnp.max(sc, axis=-1, keepdims=True)
            p = jnp.exp(sc)
            inv = pl.reciprocal(jnp.sum(p, axis=-1, keepdims=True), approx=True)
            p_bf = (p * inv).astype(jnp.bfloat16)

            head_out = jnp.dot(p_bf, vh,
                               preferred_element_type=jnp.float32)      # (T, hs)

            # Fold the head concat into the projection: accumulate per head.
            y_b = y_b + jnp.dot(head_out.astype(jnp.bfloat16),
                                wproj[c0:c0 + hs, :],
                                preferred_element_type=jnp.float32)     # (T, C)

        o_ref[r0:r0 + T, :] = (y_b + bias).astype(o_ref.dtype)


# ----------------------------------------------------------------------------
# One-time (parameter-load time) weight packing — NOT re-run per forward call.
# ----------------------------------------------------------------------------
def pack_mha_params(wq, wk, wv, w_proj, b_proj):
    """wq/wk/wv: (H, C, hs) f32; w_proj: (C, C) (in,out); b_proj: (C,)."""
    H, C, hs = wq.shape
    assert H * hs == C == n_embd

    def pack(w):                                   # (H, C, hs) -> (C, H*hs)
        return jnp.transpose(w, (1, 0, 2)).reshape(C, H * hs)

    scale = jnp.float32(C) ** -0.5                 # PyTorch scales by n_embd (== C)
    wqkv = jnp.concatenate([pack(wq) * scale, pack(wk), pack(wv)], axis=-1)
    return (wqkv.astype(jnp.bfloat16),             # (C, 3C)
            w_proj.astype(jnp.bfloat16),           # (C, C)
            jnp.asarray(b_proj, jnp.float32).reshape(1, C),
            H)


# ----------------------------------------------------------------------------
# Forward wrapper (takes pre-packed weights).
# ----------------------------------------------------------------------------
def multi_head_attention(x, wqkv, wproj, bproj, *, num_heads):
    B, T, C = x.shape
    xf = x.reshape(B * T, C)                       # row-major contiguous: free

    kernel = functools.partial(_mha_fused_kernel,
                               batch=B, seq_len=T, num_heads=num_heads)

    out = pl.pallas_call(
        kernel,
        out_shape=jax.ShapeDtypeStruct((B * T, C), x.dtype),
        in_specs=[pl.BlockSpec(memory_space=pltpu.MemorySpace.VMEM)
                  for _ in range(4)],
        out_specs=pl.BlockSpec(memory_space=pltpu.MemorySpace.VMEM),
    )(xf, wqkv, wproj, bproj)

    return out.reshape(B, T, C)


# ----------------------------------------------------------------------------
# Pure-JAX f32 reference (mirrors the PyTorch per-head module, eval mode).
# ----------------------------------------------------------------------------
def _reference(x, wq, wk, wv, w_proj, b_proj):
    B, T, C = x.shape
    H, _, hs = wq.shape
    row = jnp.arange(T)[:, None]
    col = jnp.arange(T)[None, :]
    outs = []
    for h in range(H):
        q = x @ wq[h]
        k = x @ wk[h]
        v = x @ wv[h]
        wei = (q @ jnp.swapaxes(k, -2, -1)) * (C ** -0.5)
        wei = jnp.where(row >= col, wei, -jnp.inf)
        wei = jax.nn.softmax(wei, axis=-1)
        outs.append(wei @ v)
    cat = jnp.concatenate(outs, axis=-1)
    return cat @ w_proj + b_proj


if __name__ == "__main__":
    B, T, C = 2, 8, n_embd
    num_heads, head_size = 4, n_embd // 4

    key = jax.random.PRNGKey(0)
    kx, kq, kk, kv, kw, kb = jax.random.split(key, 6)

    x = jax.random.normal(kx, (B, T, C), dtype=jnp.float32)
    wq = jax.random.normal(kq, (num_heads, C, head_size), dtype=jnp.float32) * 0.1
    wk = jax.random.normal(kk, (num_heads, C, head_size), dtype=jnp.float32) * 0.1
    wv = jax.random.normal(kv, (num_heads, C, head_size), dtype=jnp.float32) * 0.1
    w_proj = jax.random.normal(kw, (C, C), dtype=jnp.float32) * 0.1
    b_proj = jax.random.normal(kb, (C,), dtype=jnp.float32) * 0.1

    # Pack once (parameter-load time), reuse for every forward call.
    wqkv, wproj_p, bproj_p, H = pack_mha_params(wq, wk, wv, w_proj, b_proj)
    wqkv, wproj_p, bproj_p = jax.block_until_ready((wqkv, wproj_p, bproj_p))

    out = multi_head_attention(x, wqkv, wproj_p, bproj_p, num_heads=H)
    out = jax.block_until_ready(out)

    ref = _reference(x, wq, wk, wv, w_proj, b_proj)
    assert out.shape == (B, T, C)
    # Tolerance absorbs bf16 MXU operands (f32 accumulation) + approx reciprocal.
    assert jnp.allclose(out, ref, atol=2.5e-2, rtol=2.5e-2), "mismatch vs reference"

    print("KERNEL_OK")
</pallas_src>

<mosaic_0001>
module attributes {stable_mosaic.version = 11 : i64} {
  func.func @_mha_fused_kernel(%arg0: memref<16x64xf32, #tpu.memory_space<vmem>>, %arg1: memref<64x192xbf16, #tpu.memory_space<vmem>>, %arg2: memref<64x64xbf16, #tpu.memory_space<vmem>>, %arg3: memref<1x64xf32, #tpu.memory_space<vmem>>, %arg4: memref<16x64xf32, #tpu.memory_space<vmem>>) attributes {dimension_semantics = [], scalar_prefetch = 0 : i64, scratch_operands = 0 : i64, tpu.core_type = #tpu.core_type<tc>} {
    %c0 = arith.constant 0 : index
    %c0_0 = arith.constant 0 : index
    %0 = vector.load %arg0[%c0, %c0_0] : memref<16x64xf32, #tpu.memory_space<vmem>>, vector<16x64xf32>
    %1 = arith.truncf %0 : vector<16x64xf32> to vector<16x64xbf16>
    %c0_1 = arith.constant 0 : index
    %c0_2 = arith.constant 0 : index
    %2 = vector.load %arg1[%c0_1, %c0_2] : memref<64x192xbf16, #tpu.memory_space<vmem>>, vector<64x192xbf16>
    %cst = arith.constant dense<0.000000e+00> : vector<16x192xf32>
    %3 = tpu.matmul %1, %2, %cst {dimension_numbers = #tpu.dot_dimension_numbers<[1], [0], [0], [1], [0, 0, 1, 1], [], []>} : vector<16x64xbf16>, vector<64x192xbf16>, vector<16x192xf32> -> vector<16x192xf32>
    %c0_3 = arith.constant 0 : index
    %c0_4 = arith.constant 0 : index
    %4 = vector.load %arg2[%c0_3, %c0_4] : memref<64x64xbf16, #tpu.memory_space<vmem>>, vector<64x64xbf16>
    %c0_5 = arith.constant 0 : index
    %c0_6 = arith.constant 0 : index
    %5 = vector.load %arg3[%c0_5, %c0_6] : memref<1x64xf32, #tpu.memory_space<vmem>>, vector<1x64xf32>
    %6 = tpu.iota {dimensions = array<i32: 0>} : vector<8x8xi32>
    %7 = tpu.iota {dimensions = array<i32: 1>} : vector<8x8xi32>
    %8 = arith.cmpi sge, %6, %7 : vector<8x8xi32>
    %cst_7 = arith.constant 0.000000e+00 : f32
    %9 = vector.broadcast %cst_7 : f32 to vector<8x64xf32>
    %10 = vector.extract_strided_slice %3 {offsets = [0, 0], sizes = [8, 16], strides = [1, 1]} : vector<16x192xf32> to vector<8x16xf32>
    %11 = arith.truncf %10 : vector<8x16xf32> to vector<8x16xbf16>
    %12 = vector.extract_strided_slice %3 {offsets = [0, 64], sizes = [8, 16], strides = [1, 1]} : vector<16x192xf32> to vector<8x16xf32>
    %13 = arith.truncf %12 : vector<8x16xf32> to vector<8x16xbf16>
    %14 = vector.extract_strided_slice %3 {offsets = [0, 128], sizes = [8, 16], strides = [1, 1]} : vector<16x192xf32> to vector<8x16xf32>
    %15 = arith.truncf %14 : vector<8x16xf32> to vector<8x16xbf16>
    %cst_8 = arith.constant dense<0.000000e+00> : vector<8x8xf32>
    %16 = tpu.matmul %11, %13, %cst_8 {dimension_numbers = #tpu.dot_dimension_numbers<[1], [1], [0], [0], [0, 0, 1, 0], [], []>} : vector<8x16xbf16>, vector<8x16xbf16>, vector<8x8xf32> -> vector<8x8xf32>
    %cst_9 = arith.constant -1.000000e+30 : f32
    %17 = vector.broadcast %cst_9 : f32 to vector<8x8xf32>
    %18 = arith.select %8, %16, %17 : vector<8x8xi1>, vector<8x8xf32>
    %cst_10 = arith.constant dense<0xFF800000> : vector<8xf32>
    %19 = vector.multi_reduction <maximumf>, %18, %cst_10 [1] : vector<8x8xf32> to vector<8xf32>
    %20 = vector.shape_cast %19 : vector<8xf32> to vector<8x1xf32>
    %21 = vector.broadcast %20 : vector<8x1xf32> to vector<8x8xf32>
    %22 = arith.subf %18, %21 : vector<8x8xf32>
    %23 = math.exp %22 : vector<8x8xf32>
    %cst_11 = arith.constant dense<0.000000e+00> : vector<8xf32>
    %24 = vector.multi_reduction <add>, %23, %cst_11 [1] : vector<8x8xf32> to vector<8xf32>
    %25 = vector.shape_cast %24 : vector<8xf32> to vector<8x1xf32>
    %26 = tpu.reciprocal %25 {approx = true} : vector<8x1xf32> -> vector<8x1xf32>
    %27 = vector.broadcast %26 : vector<8x1xf32> to vector<8x8xf32>
    %28 = arith.mulf %23, %27 : vector<8x8xf32>
    %29 = arith.truncf %28 : vector<8x8xf32> to vector<8x8xbf16>
    %cst_12 = arith.constant dense<0.000000e+00> : vector<8x16xf32>
    %30 = tpu.matmul %29, %15, %cst_12 {dimension_numbers = #tpu.dot_dimension_numbers<[1], [0], [0], [1], [0, 0, 1, 1], [], []>} : vector<8x8xbf16>, vector<8x16xbf16>, vector<8x16xf32> -> vector<8x16xf32>
    %31 = arith.truncf %30 : vector<8x16xf32> to vector<8x16xbf16>
    %32 = vector.extract_strided_slice %4 {offsets = [0, 0], sizes = [16, 64], strides = [1, 1]} : vector<64x64xbf16> to vector<16x64xbf16>
    %cst_13 = arith.constant dense<0.000000e+00> : vector<8x64xf32>
    %33 = tpu.matmul %31, %32, %cst_13 {dimension_numbers = #tpu.dot_dimension_numbers<[1], [0], [0], [1], [0, 0, 1, 1], [], []>} : vector<8x16xbf16>, vector<16x64xbf16>, vector<8x64xf32> -> vector<8x64xf32>
    %34 = arith.addf %9, %33 : vector<8x64xf32>
    %35 = vector.extract_strided_slice %3 {offsets = [0, 16], sizes = [8, 16], strides = [1, 1]} : vector<16x192xf32> to vector<8x16xf32>
    %36 = arith.truncf %35 : vector<8x16xf32> to vector<8x16xbf16>
    %37 = vector.extract_strided_slice %3 {offsets = [0, 80], sizes = [8, 16], strides = [1, 1]} : vector<16x192xf32> to vector<8x16xf32>
    %38 = arith.truncf %37 : vector<8x16xf32> to vector<8x16xbf16>
    %39 = vector.extract_strided_slice %3 {offsets = [0, 144], sizes = [8, 16], strides = [1, 1]} : vector<16x192xf32> to vector<8x16xf32>
    %40 = arith.truncf %39 : vector<8x16xf32> to vector<8x16xbf16>
    %cst_14 = arith.constant dense<0.000000e+00> : vector<8x8xf32>
    %41 = tpu.matmul %36, %38, %cst_14 {dimension_numbers = #tpu.dot_dimension_numbers<[1], [1], [0], [0], [0, 0, 1, 0], [], []>} : vector<8x16xbf16>, vector<8x16xbf16>, vector<8x8xf32> -> vector<8x8xf32>
    %cst_15 = arith.constant -1.000000e+30 : f32
    %42 = vector.broadcast %cst_15 : f32 to vector<8x8xf32>
    %43 = arith.select %8, %41, %42 : vector<8x8xi1>, vector<8x8xf32>
    %cst_16 = arith.constant dense<0xFF800000> : vector<8xf32>
    %44 = vector.multi_reduction <maximumf>, %43, %cst_16 [1] : vector<8x8xf32> to vector<8xf32>
    %45 = vector.shape_cast %44 : vector<8xf32> to vector<8x1xf32>
    %46 = vector.broadcast %45 : vector<8x1xf32> to vector<8x8xf32>
    %47 = arith.subf %43, %46 : vector<8x8xf32>
    %48 = math.exp %47 : vector<8x8xf32>
    %cst_17 = arith.constant dense<0.000000e+00> : vector<8xf32>
    %49 = vector.multi_reduction <add>, %48, %cst_17 [1] : vector<8x8xf32> to vector<8xf32>
    %50 = vector.shape_cast %49 : vector<8xf32> to vector<8x1xf32>
    %51 = tpu.reciprocal %50 {approx = true} : vector<8x1xf32> -> vector<8x1xf32>
    %52 = vector.broadcast %51 : vector<8x1xf32> to vector<8x8xf32>
    %53 = arith.mulf %48, %52 : vector<8x8xf32>
    %54 = arith.truncf %53 : vector<8x8xf32> to vector<8x8xbf16>
    %cst_18 = arith.constant dense<0.000000e+00> : vector<8x16xf32>
    %55 = tpu.matmul %54, %40, %cst_18 {dimension_numbers = #tpu.dot_dimension_numbers<[1], [0], [0], [1], [0, 0, 1, 1], [], []>} : vector<8x8xbf16>, vector<8x16xbf16>, vector<8x16xf32> -> vector<8x16xf32>
    %56 = arith.truncf %55 : vector<8x16xf32> to vector<8x16xbf16>
    %57 = vector.extract_strided_slice %4 {offsets = [16, 0], sizes = [16, 64], strides = [1, 1]} : vector<64x64xbf16> to vector<16x64xbf16>
    %cst_19 = arith.constant dense<0.000000e+00> : vector<8x64xf32>
    %58 = tpu.matmul %56, %57, %cst_19 {dimension_numbers = #tpu.dot_dimension_numbers<[1], [0], [0], [1], [0, 0, 1, 1], [], []>} : vector<8x16xbf16>, vector<16x64xbf16>, vector<8x64xf32> -> vector<8x64xf32>
    %59 = arith.addf %34, %58 : vector<8x64xf32>
    %60 = vector.extract_strided_slice %3 {offsets = [0, 32], sizes = [8, 16], strides = [1, 1]} : vector<16x192xf32> to vector<8x16xf32>
    %61 = arith.truncf %60 : vector<8x16xf32> to vector<8x16xbf16>
    %62 = vector.extract_strided_slice %3 {offsets = [0, 96], sizes = [8, 16], strides = [1, 1]} : vector<16x192xf32> to vector<8x16xf32>
    %63 = arith.truncf %62 : vector<8x16xf32> to vector<8x16xbf16>
    %64 = vector.extract_strided_slice %3 {offsets = [0, 160], sizes = [8, 16], strides = [1, 1]} : vector<16x192xf32> to vector<8x16xf32>
    %65 = arith.truncf %64 : vector<8x16xf32> to vector<8x16xbf16>
    %cst_20 = arith.constant dense<0.000000e+00> : vector<8x8xf32>
    %66 = tpu.matmul %61, %63, %cst_20 {dimension_numbers = #tpu.dot_dimension_numbers<[1], [1], [0], [0], [0, 0, 1, 0], [], []>} : vector<8x16xbf16>, vector<8x16xbf16>, vector<8x8xf32> -> vector<8x8xf32>
    %cst_21 = arith.constant -1.000000e+30 : f32
    %67 = vector.broadcast %cst_21 : f32 to vector<8x8xf32>
    %68 = arith.select %8, %66, %67 : vector<8x8xi1>, vector<8x8xf32>
    %cst_22 = arith.constant dense<0xFF800000> : vector<8xf32>
    %69 = vector.multi_reduction <maximumf>, %68, %cst_22 [1] : vector<8x8xf32> to vector<8xf32>
    %70 = vector.shape_cast %69 : vector<8xf32> to vector<8x1xf32>
    %71 = vector.broadcast %70 : vector<8x1xf32> to vector<8x8xf32>
    %72 = arith.subf %68, %71 : vector<8x8xf32>
    %73 = math.exp %72 : vector<8x8xf32>
    %cst_23 = arith.constant dense<0.000000e+00> : vector<8xf32>
    %74 = vector.multi_reduction <add>, %73, %cst_23 [1] : vector<8x8xf32> to vector<8xf32>
    %75 = vector.shape_cast %74 : vector<8xf32> to vector<8x1xf32>
    %76 = tpu.reciprocal %75 {approx = true} : vector<8x1xf32> -> vector<8x1xf32>
    %77 = vector.broadcast %76 : vector<8x1xf32> to vector<8x8xf32>
    %78 = arith.mulf %73, %77 : vector<8x8xf32>
    %79 = arith.truncf %78 : vector<8x8xf32> to vector<8x8xbf16>
    %cst_24 = arith.constant dense<0.000000e+00> : vector<8x16xf32>
    %80 = tpu.matmul %79, %65, %cst_24 {dimension_numbers = #tpu.dot_dimension_numbers<[1], [0], [0], [1], [0, 0, 1, 1], [], []>} : vector<8x8xbf16>, vector<8x16xbf16>, vector<8x16xf32> -> vector<8x16xf32>
    %81 = arith.truncf %80 : vector<8x16xf32> to vector<8x16xbf16>
    %82 = vector.extract_strided_slice %4 {offsets = [32, 0], sizes = [16, 64], strides = [1, 1]} : vector<64x64xbf16> to vector<16x64xbf16>
    %cst_25 = arith.constant dense<0.000000e+00> : vector<8x64xf32>
    %83 = tpu.matmul %81, %82, %cst_25 {dimension_numbers = #tpu.dot_dimension_numbers<[1], [0], [0], [1], [0, 0, 1, 1], [], []>} : vector<8x16xbf16>, vector<16x64xbf16>, vector<8x64xf32> -> vector<8x64xf32>
    %84 = arith.addf %59, %83 : vector<8x64xf32>
    %85 = vector.extract_strided_slice %3 {offsets = [0, 48], sizes = [8, 16], strides = [1, 1]} : vector<16x192xf32> to vector<8x16xf32>
    %86 = arith.truncf %85 : vector<8x16xf32> to vector<8x16xbf16>
    %87 = vector.extract_strided_slice %3 {offsets = [0, 112], sizes = [8, 16], strides = [1, 1]} : vector<16x192xf32> to vector<8x16xf32>
    %88 = arith.truncf %87 : vector<8x16xf32> to vector<8x16xbf16>
    %89 = vector.extract_strided_slice %3 {offsets = [0, 176], sizes = [8, 16], strides = [1, 1]} : vector<16x192xf32> to vector<8x16xf32>
    %90 = arith.truncf %89 : vector<8x16xf32> to vector<8x16xbf16>
    %cst_26 = arith.constant dense<0.000000e+00> : vector<8x8xf32>
    %91 = tpu.matmul %86, %88, %cst_26 {dimension_numbers = #tpu.dot_dimension_numbers<[1], [1], [0], [0], [0, 0, 1, 0], [], []>} : vector<8x16xbf16>, vector<8x16xbf16>, vector<8x8xf32> -> vector<8x8xf32>
    %cst_27 = arith.constant -1.000000e+30 : f32
    %92 = vector.broadcast %cst_27 : f32 to vector<8x8xf32>
    %93 = arith.select %8, %91, %92 : vector<8x8xi1>, vector<8x8xf32>
    %cst_28 = arith.constant dense<0xFF800000> : vector<8xf32>
    %94 = vector.multi_reduction <maximumf>, %93, %cst_28 [1] : vector<8x8xf32> to vector<8xf32>
    %95 = vector.shape_cast %94 : vector<8xf32> to vector<8x1xf32>
    %96 = vector.broadcast %95 : vector<8x1xf32> to vector<8x8xf32>
    %97 = arith.subf %93, %96 : vector<8x8xf32>
    %98 = math.exp %97 : vector<8x8xf32>
    %cst_29 = arith.constant dense<0.000000e+00> : vector<8xf32>
    %99 = vector.multi_reduction <add>, %98, %cst_29 [1] : vector<8x8xf32> to vector<8xf32>
    %100 = vector.shape_cast %99 : vector<8xf32> to vector<8x1xf32>
    %101 = tpu.reciprocal %100 {approx = true} : vector<8x1xf32> -> vector<8x1xf32>
    %102 = vector.broadcast %101 : vector<8x1xf32> to vector<8x8xf32>
    %103 = arith.mulf %98, %102 : vector<8x8xf32>
    %104 = arith.truncf %103 : vector<8x8xf32> to vector<8x8xbf16>
    %cst_30 = arith.constant dense<0.000000e+00> : vector<8x16xf32>
    %105 = tpu.matmul %104, %90, %cst_30 {dimension_numbers = #tpu.dot_dimension_numbers<[1], [0], [0], [1], [0, 0, 1, 1], [], []>} : vector<8x8xbf16>, vector<8x16xbf16>, vector<8x16xf32> -> vector<8x16xf32>
    %106 = arith.truncf %105 : vector<8x16xf32> to vector<8x16xbf16>
    %107 = vector.extract_strided_slice %4 {offsets = [48, 0], sizes = [16, 64], strides = [1, 1]} : vector<64x64xbf16> to vector<16x64xbf16>
    %cst_31 = arith.constant dense<0.000000e+00> : vector<8x64xf32>
    %108 = tpu.matmul %106, %107, %cst_31 {dimension_numbers = #tpu.dot_dimension_numbers<[1], [0], [0], [1], [0, 0, 1, 1], [], []>} : vector<8x16xbf16>, vector<16x64xbf16>, vector<8x64xf32> -> vector<8x64xf32>
    %109 = arith.addf %84, %108 : vector<8x64xf32>
    %110 = vector.broadcast %5 : vector<1x64xf32> to vector<8x64xf32>
    %111 = arith.addf %109, %110 : vector<8x64xf32>
    %c0_32 = arith.constant 0 : index
    %c0_33 = arith.constant 0 : index
    %112 = vector.load %arg4[%c0_32, %c0_33] : memref<16x64xf32, #tpu.memory_space<vmem>>, vector<8x64xf32>
    tpu.vector_store %arg4[%c0_32, %c0_33], %111 {strides = array<i32>} : memref<16x64xf32, #tpu.memory_space<vmem>>, vector<8x64xf32>,
    %cst_34 = arith.constant 0.000000e+00 : f32
    %113 = vector.broadcast %cst_34 : f32 to vector<8x64xf32>
    %114 = vector.extract_strided_slice %3 {offsets = [8, 0], sizes = [8, 16], strides = [1, 1]} : vector<16x192xf32> to vector<8x16xf32>
    %115 = arith.truncf %114 : vector<8x16xf32> to vector<8x16xbf16>
    %116 = vector.extract_strided_slice %3 {offsets = [8, 64], sizes = [8, 16], strides = [1, 1]} : vector<16x192xf32> to vector<8x16xf32>
    %117 = arith.truncf %116 : vector<8x16xf32> to vector<8x16xbf16>
    %118 = vector.extract_strided_slice %3 {offsets = [8, 128], sizes = [8, 16], strides = [1, 1]} : vector<16x192xf32> to vector<8x16xf32>
    %119 = arith.truncf %118 : vector<8x16xf32> to vector<8x16xbf16>
    %cst_35 = arith.constant dense<0.000000e+00> : vector<8x8xf32>
    %120 = tpu.matmul %115, %117, %cst_35 {dimension_numbers = #tpu.dot_dimension_numbers<[1], [1], [0], [0], [0, 0, 1, 0], [], []>} : vector<8x16xbf16>, vector<8x16xbf16>, vector<8x8xf32> -> vector<8x8xf32>
    %cst_36 = arith.constant -1.000000e+30 : f32
    %121 = vector.broadcast %cst_36 : f32 to vector<8x8xf32>
    %122 = arith.select %8, %120, %121 : vector<8x8xi1>, vector<8x8xf32>
    %cst_37 = arith.constant dense<0xFF800000> : vector<8xf32>
    %123 = vector.multi_reduction <maximumf>, %122, %cst_37 [1] : vector<8x8xf32> to vector<8xf32>
    %124 = vector.shape_cast %123 : vector<8xf32> to vector<8x1xf32>
    %125 = vector.broadcast %124 : vector<8x1xf32> to vector<8x8xf32>
    %126 = arith.subf %122, %125 : vector<8x8xf32>
    %127 = math.exp %126 : vector<8x8xf32>
    %cst_38 = arith.constant dense<0.000000e+00> : vector<8xf32>
    %128 = vector.multi_reduction <add>, %127, %cst_38 [1] : vector<8x8xf32> to vector<8xf32>
    %129 = vector.shape_cast %128 : vector<8xf32> to vector<8x1xf32>
    %130 = tpu.reciprocal %129 {approx = true} : vector<8x1xf32> -> vector<8x1xf32>
    %131 = vector.broadcast %130 : vector<8x1xf32> to vector<8x8xf32>
    %132 = arith.mulf %127, %131 : vector<8x8xf32>
    %133 = arith.truncf %132 : vector<8x8xf32> to vector<8x8xbf16>
    %cst_39 = arith.constant dense<0.000000e+00> : vector<8x16xf32>
    %134 = tpu.matmul %133, %119, %cst_39 {dimension_numbers = #tpu.dot_dimension_numbers<[1], [0], [0], [1], [0, 0, 1, 1], [], []>} : vector<8x8xbf16>, vector<8x16xbf16>, vector<8x16xf32> -> vector<8x16xf32>
    %135 = arith.truncf %134 : vector<8x16xf32> to vector<8x16xbf16>
    %136 = vector.extract_strided_slice %4 {offsets = [0, 0], sizes = [16, 64], strides = [1, 1]} : vector<64x64xbf16> to vector<16x64xbf16>
    %cst_40 = arith.constant dense<0.000000e+00> : vector<8x64xf32>
    %137 = tpu.matmul %135, %136, %cst_40 {dimension_numbers = #tpu.dot_dimension_numbers<[1], [0], [0], [1], [0, 0, 1, 1], [], []>} : vector<8x16xbf16>, vector<16x64xbf16>, vector<8x64xf32> -> vector<8x64xf32>
    %138 = arith.addf %113, %137 : vector<8x64xf32>
    %139 = vector.extract_strided_slice %3 {offsets = [8, 16], sizes = [8, 16], strides = [1, 1]} : vector<16x192xf32> to vector<8x16xf32>
    %140 = arith.truncf %139 : vector<8x16xf32> to vector<8x16xbf16>
    %141 = vector.extract_strided_slice %3 {offsets = [8, 80], sizes = [8, 16], strides = [1, 1]} : vector<16x192xf32> to vector<8x16xf32>
    %142 = arith.truncf %141 : vector<8x16xf32> to vector<8x16xbf16>
    %143 = vector.extract_strided_slice %3 {offsets = [8, 144], sizes = [8, 16], strides = [1, 1]} : vector<16x192xf32> to vector<8x16xf32>
    %144 = arith.truncf %143 : vector<8x16xf32> to vector<8x16xbf16>
    %cst_41 = arith.constant dense<0.000000e+00> : vector<8x8xf32>
    %145 = tpu.matmul %140, %142, %cst_41 {dimension_numbers = #tpu.dot_dimension_numbers<[1], [1], [0], [0], [0, 0, 1, 0], [], []>} : vector<8x16xbf16>, vector<8x16xbf16>, vector<8x8xf32> -> vector<8x8xf32>
    %cst_42 = arith.constant -1.000000e+30 : f32
    %146 = vector.broadcast %cst_42 : f32 to vector<8x8xf32>
    %147 = arith.select %8, %145, %146 : vector<8x8xi1>, vector<8x8xf32>
    %cst_43 = arith.constant dense<0xFF800000> : vector<8xf32>
    %148 = vector.multi_reduction <maximumf>, %147, %cst_43 [1] : vector<8x8xf32> to vector<8xf32>
    %149 = vector.shape_cast %148 : vector<8xf32> to vector<8x1xf32>
    %150 = vector.broadcast %149 : vector<8x1xf32> to vector<8x8xf32>
    %151 = arith.subf %147, %150 : vector<8x8xf32>
    %152 = math.exp %151 : vector<8x8xf32>
    %cst_44 = arith.constant dense<0.000000e+00> : vector<8xf32>
    %153 = vector.multi_reduction <add>, %152, %cst_44 [1] : vector<8x8xf32> to vector<8xf32>
    %154 = vector.shape_cast %153 : vector<8xf32> to vector<8x1xf32>
    %155 = tpu.reciprocal %154 {approx = true} : vector<8x1xf32> -> vector<8x1xf32>
    %156 = vector.broadcast %155 : vector<8x1xf32> to vector<8x8xf32>
    %157 = arith.mulf %152, %156 : vector<8x8xf32>
    %158 = arith.truncf %157 : vector<8x8xf32> to vector<8x8xbf16>
    %cst_45 = arith.constant dense<0.000000e+00> : vector<8x16xf32>
    %159 = tpu.matmul %158, %144, %cst_45 {dimension_numbers = #tpu.dot_dimension_numbers<[1], [0], [0], [1], [0, 0, 1, 1], [], []>} : vector<8x8xbf16>, vector<8x16xbf16>, vector<8x16xf32> -> vector<8x16xf32>
    %160 = arith.truncf %159 : vector<8x16xf32> to vector<8x16xbf16>
    %161 = vector.extract_strided_slice %4 {offsets = [16, 0], sizes = [16, 64], strides = [1, 1]} : vector<64x64xbf16> to vector<16x64xbf16>
    %cst_46 = arith.constant dense<0.000000e+00> : vector<8x64xf32>
    %162 = tpu.matmul %160, %161, %cst_46 {dimension_numbers = #tpu.dot_dimension_numbers<[1], [0], [0], [1], [0, 0, 1, 1], [], []>} : vector<8x16xbf16>, vector<16x64xbf16>, vector<8x64xf32> -> vector<8x64xf32>
    %163 = arith.addf %138, %162 : vector<8x64xf32>
    %164 = vector.extract_strided_slice %3 {offsets = [8, 32], sizes = [8, 16], strides = [1, 1]} : vector<16x192xf32> to vector<8x16xf32>
    %165 = arith.truncf %164 : vector<8x16xf32> to vector<8x16xbf16>
    %166 = vector.extract_strided_slice %3 {offsets = [8, 96], sizes = [8, 16], strides = [1, 1]} : vector<16x192xf32> to vector<8x16xf32>
    %167 = arith.truncf %166 : vector<8x16xf32> to vector<8x16xbf16>
    %168 = vector.extract_strided_slice %3 {offsets = [8, 160], sizes = [8, 16], strides = [1, 1]} : vector<16x192xf32> to vector<8x16xf32>
    %169 = arith.truncf %168 : vector<8x16xf32> to vector<8x16xbf16>
    %cst_47 = arith.constant dense<0.000000e+00> : vector<8x8xf32>
    %170 = tpu.matmul %165, %167, %cst_47 {dimension_numbers = #tpu.dot_dimension_numbers<[1], [1], [0], [0], [0, 0, 1, 0], [], []>} : vector<8x16xbf16>, vector<8x16xbf16>, vector<8x8xf32> -> vector<8x8xf32>
    %cst_48 = arith.constant -1.000000e+30 : f32
    %171 = vector.broadcast %cst_48 : f32 to vector<8x8xf32>
    %172 = arith.select %8, %170, %171 : vector<8x8xi1>, vector<8x8xf32>
    %cst_49 = arith.constant dense<0xFF800000> : vector<8xf32>
    %173 = vector.multi_reduction <maximumf>, %172, %cst_49 [1] : vector<8x8xf32> to vector<8xf32>
    %174 = vector.shape_cast %173 : vector<8xf32> to vector<8x1xf32>
    %175 = vector.broadcast %174 : vector<8x1xf32> to vector<8x8xf32>
    %176 = arith.subf %172, %175 : vector<8x8xf32>
    %177 = math.exp %176 : vector<8x8xf32>
    %cst_50 = arith.constant dense<0.000000e+00> : vector<8xf32>
    %178 = vector.multi_reduction <add>, %177, %cst_50 [1] : vector<8x8xf32> to vector<8xf32>
    %179 = vector.shape_cast %178 : vector<8xf32> to vector<8x1xf32>
    %180 = tpu.reciprocal %179 {approx = true} : vector<8x1xf32> -> vector<8x1xf32>
    %181 = vector.broadcast %180 : vector<8x1xf32> to vector<8x8xf32>
    %182 = arith.mulf %177, %181 : vector<8x8xf32>
    %183 = arith.truncf %182 : vector<8x8xf32> to vector<8x8xbf16>
    %cst_51 = arith.constant dense<0.000000e+00> : vector<8x16xf32>
    %184 = tpu.matmul %183, %169, %cst_51 {dimension_numbers = #tpu.dot_dimension_numbers<[1], [0], [0], [1], [0, 0, 1, 1], [], []>} : vector<8x8xbf16>, vector<8x16xbf16>, vector<8x16xf32> -> vector<8x16xf32>
    %185 = arith.truncf %184 : vector<8x16xf32> to vector<8x16xbf16>
    %186 = vector.extract_strided_slice %4 {offsets = [32, 0], sizes = [16, 64], strides = [1, 1]} : vector<64x64xbf16> to vector<16x64xbf16>
    %cst_52 = arith.constant dense<0.000000e+00> : vector<8x64xf32>
    %187 = tpu.matmul %185, %186, %cst_52 {dimension_numbers = #tpu.dot_dimension_numbers<[1], [0], [0], [1], [0, 0, 1, 1], [], []>} : vector<8x16xbf16>, vector<16x64xbf16>, vector<8x64xf32> -> vector<8x64xf32>
    %188 = arith.addf %163, %187 : vector<8x64xf32>
    %189 = vector.extract_strided_slice %3 {offsets = [8, 48], sizes = [8, 16], strides = [1, 1]} : vector<16x192xf32> to vector<8x16xf32>
    %190 = arith.truncf %189 : vector<8x16xf32> to vector<8x16xbf16>
    %191 = vector.extract_strided_slice %3 {offsets = [8, 112], sizes = [8, 16], strides = [1, 1]} : vector<16x192xf32> to vector<8x16xf32>
    %192 = arith.truncf %191 : vector<8x16xf32> to vector<8x16xbf16>
    %193 = vector.extract_strided_slice %3 {offsets = [8, 176], sizes = [8, 16], strides = [1, 1]} : vector<16x192xf32> to vector<8x16xf32>
    %194 = arith.truncf %193 : vector<8x16xf32> to vector<8x16xbf16>
    %cst_53 = arith.constant dense<0.000000e+00> : vector<8x8xf32>
    %195 = tpu.matmul %190, %192, %cst_53 {dimension_numbers = #tpu.dot_dimension_numbers<[1], [1], [0], [0], [0, 0, 1, 0], [], []>} : vector<8x16xbf16>, vector<8x16xbf16>, vector<8x8xf32> -> vector<8x8xf32>
    %cst_54 = arith.constant -1.000000e+30 : f32
    %196 = vector.broadcast %cst_54 : f32 to vector<8x8xf32>
    %197 = arith.select %8, %195, %196 : vector<8x8xi1>, vector<8x8xf32>
    %cst_55 = arith.constant dense<0xFF800000> : vector<8xf32>
    %198 = vector.multi_reduction <maximumf>, %197, %cst_55 [1] : vector<8x8xf32> to vector<8xf32>
    %199 = vector.shape_cast %198 : vector<8xf32> to vector<8x1xf32>
    %200 = vector.broadcast %199 : vector<8x1xf32> to vector<8x8xf32>
    %201 = arith.subf %197, %200 : vector<8x8xf32>
    %202 = math.exp %201 : vector<8x8xf32>
    %cst_56 = arith.constant dense<0.000000e+00> : vector<8xf32>
    %203 = vector.multi_reduction <add>, %202, %cst_56 [1] : vector<8x8xf32> to vector<8xf32>
    %204 = vector.shape_cast %203 : vector<8xf32> to vector<8x1xf32>
    %205 = tpu.reciprocal %204 {approx = true} : vector<8x1xf32> -> vector<8x1xf32>
    %206 = vector.broadcast %205 : vector<8x1xf32> to vector<8x8xf32>
    %207 = arith.mulf %202, %206 : vector<8x8xf32>
    %208 = arith.truncf %207 : vector<8x8xf32> to vector<8x8xbf16>
    %cst_57 = arith.constant dense<0.000000e+00> : vector<8x16xf32>
    %209 = tpu.matmul %208, %194, %cst_57 {dimension_numbers = #tpu.dot_dimension_numbers<[1], [0], [0], [1], [0, 0, 1, 1], [], []>} : vector<8x8xbf16>, vector<8x16xbf16>, vector<8x16xf32> -> vector<8x16xf32>
    %210 = arith.truncf %209 : vector<8x16xf32> to vector<8x16xbf16>
    %211 = vector.extract_strided_slice %4 {offsets = [48, 0], sizes = [16, 64], strides = [1, 1]} : vector<64x64xbf16> to vector<16x64xbf16>
    %cst_58 = arith.constant dense<0.000000e+00> : vector<8x64xf32>
    %212 = tpu.matmul %210, %211, %cst_58 {dimension_numbers = #tpu.dot_dimension_numbers<[1], [0], [0], [1], [0, 0, 1, 1], [], []>} : vector<8x16xbf16>, vector<16x64xbf16>, vector<8x64xf32> -> vector<8x64xf32>
    %213 = arith.addf %188, %212 : vector<8x64xf32>
    %214 = vector.broadcast %5 : vector<1x64xf32> to vector<8x64xf32>
    %215 = arith.addf %213, %214 : vector<8x64xf32>
    %c8 = arith.constant 8 : index
    %c0_59 = arith.constant 0 : index
    %216 = vector.load %arg4[%c8, %c0_59] : memref<16x64xf32, #tpu.memory_space<vmem>>, vector<8x64xf32>
    tpu.vector_store %arg4[%c8, %c0_59], %215 {strides = array<i32>} : memref<16x64xf32, #tpu.memory_space<vmem>>, vector<8x64xf32>,
    return
  }
}

</mosaic_0001>

<llo_original>
// kernel: tpu_custom_call.1
$region0: #{tpu_custom_call.1}
  #allocation0 [shape = 'u32[]', space=smem, size = 0x4, offset = 0x4, fixed_abs, tag = 'smem constant byte address 0x4 - core index']
  #allocation1 [shape = 'u32[144,128]{1,0:T(1,128)}', space=vmem, size = 0x12000, scoped, tag = 'internal scratch']
  %s0 = inlined_call_operand.hbm [shape: f32[16,64], index: 0, kind: input, shape index: {}]
  %s1 = inlined_call_operand.hbm [shape: bf16[64,192], index: 1, kind: input, shape index: {}]
  %s2 = inlined_call_operand.hbm [shape: bf16[64,64], index: 2, kind: input, shape index: {}]
  %s3 = inlined_call_operand.vmem [shape: f32[1,64], index: 3, kind: input, shape index: {}]
  %s4 = inlined_call_operand.hbm [shape: f32[16,64], index: 4, kind: output, shape index: {}]
  %s5 = sld [smem:[#allocation0]]
  $region38: #{tpu_custom_call.1} parent=0
    _
  %s7 = ssub.s32 1, %s5
  %s8 = scalar_select 0, %s7, %s5
  $region1: #{tpu_custom_call.1} parent=0
    #allocation2 [shape = 'u8[8192]{0}', space=vmem, size = 0x2000, scoped, tag = 'input window, operand 0, single buffered']
    #allocation3 [shape = 's32[1]{0}', space=sflag, size = 0x4, scoped, tag = 'scoped memory for tpu_custom_call.1']
    #allocation4 [shape = 's32[1]{0}', space=sflag, size = 0x4, scoped, tag = 'scoped memory for tpu_custom_call.1']
    #allocation5 [shape = 'u8[32768]{0}', space=vmem, size = 0x8000, scoped, tag = 'input window, operand 1, single buffered']
    #allocation6 [shape = 's32[1]{0}', space=sflag, size = 0x4, scoped, tag = 'scoped memory for tpu_custom_call.1']
    #allocation7 [shape = 'u8[16384]{0}', space=vmem, size = 0x4000, scoped, tag = 'input window, operand 2, single buffered']
    #allocation8 [shape = 'u8[8192]{0}', space=vmem, size = 0x2000, scoped, tag = 'output window, operand 0, single buffered']
    %9 = vsyncpa [#allocation3], 0
    %10 = vsyncpa [#allocation6], 0
    %11 = vsyncpa [#allocation4], 0
    // Predicated region
    $region2: #{tpu_custom_call.1} parent=1 // pred_check
      _
    $region3: #{tpu_custom_call.1} parent=1 // pred_check_branch
      %13 = sbr.rel (0) target = $region5
    $region4: #{tpu_custom_call.1} parent=1 // pred_region
      %s15 = ssub.s32 256, 256
      %16 = vsyncadd [#allocation3], %s15
      %s17 = sshll.u32 [#allocation2], 4
      %s18 = int_to_ptr.vmem [resolvable:$true] %s17
      %23 = dma.hbm_to_vmem [thread:$0]  %s0, 256, %s18, [#allocation3], 128, 128, 8
    $region5: #{tpu_custom_call.1} parent=1 // pred_fallthru
      _
    // Predicated region
    $region6: #{tpu_custom_call.1} parent=1 // pred_check
      _
    $region7: #{tpu_custom_call.1} parent=1 // pred_check_branch
      %25 = sbr.rel (0) target = $region9
    $region8: #{tpu_custom_call.1} parent=1 // pred_region
      %s27 = ssub.s32 1024, 1024
      %28 = vsyncadd [#allocation6], %s27
      %s29 = sshll.u32 [#allocation5], 4
      %s30 = int_to_ptr.vmem [resolvable:$true] %s29
      %35 = dma.hbm_to_vmem [thread:$0]  %s1, 1024, %s30, [#allocation6], 128, 128, 8
    $region9: #{tpu_custom_call.1} parent=1 // pred_fallthru
      _
    // Predicated region
    $region10: #{tpu_custom_call.1} parent=1 // pred_check
      _
    $region11: #{tpu_custom_call.1} parent=1 // pred_check_branch
      %37 = sbr.rel (0) target = $region13
    $region12: #{tpu_custom_call.1} parent=1 // pred_region
      %s39 = ssub.s32 512, 512
      %40 = vsyncadd [#allocation6], %s39
      %s41 = sshll.u32 [#allocation7], 4
      %s42 = int_to_ptr.vmem [resolvable:$true] %s41
      %47 = dma.hbm_to_vmem [thread:$0]  %s2, 512, %s42, [#allocation6], 64, 64, 4
    $region13: #{tpu_custom_call.1} parent=1 // pred_fallthru
      _
    // Predicated region
    $region14: #{tpu_custom_call.1} parent=1 // pred_check
      _
    $region15: #{tpu_custom_call.1} parent=1 // pred_check_branch
      %49 = sbr.rel (0) target = $region17
    $region16: #{tpu_custom_call.1} parent=1 // pred_region
      _
    $region17: #{tpu_custom_call.1} parent=1 // pred_fallthru
      _
    // Predicated region
    $region18: #{tpu_custom_call.1} parent=1 // pred_check
      _
    $region19: #{tpu_custom_call.1} parent=1 // pred_check_branch
      %51 = sbr.rel (0) target = $region21
    $region20: #{tpu_custom_call.1} parent=1 // pred_region
      %52 = dma.done [#allocation3], 256
    $region21: #{tpu_custom_call.1} parent=1 // pred_fallthru
      _
    // Predicated region
    $region22: #{tpu_custom_call.1} parent=1 // pred_check
      _
    $region23: #{tpu_custom_call.1} parent=1 // pred_check_branch
      %54 = sbr.rel (0) target = $region25
    $region24: #{tpu_custom_call.1} parent=1 // pred_region
      %55 = dma.done [#allocation6], 1024
    $region25: #{tpu_custom_call.1} parent=1 // pred_fallthru
      _
    // Predicated region
    $region26: #{tpu_custom_call.1} parent=1 // pred_check
      _
    $region27: #{tpu_custom_call.1} parent=1 // pred_check_branch
      %57 = sbr.rel (0) target = $region29
    $region28: #{tpu_custom_call.1} parent=1 // pred_region
      %58 = dma.done [#allocation6], 512
    $region29: #{tpu_custom_call.1} parent=1 // pred_fallthru
      _
    %v60 = vld [vmem:[#allocation2] sm:$0xff]
    %v61 = vld [vmem:[#allocation2 + $0x8] sm:$0xff]
    %v62 = vpack.c.bf16 %v61, %v60
    %v63 = vld [vmem:[#allocation5] sm:$0xff]
    %v64 = vld [vmem:[#allocation5 + $0x8] sm:$0xff]
    %v65 = vld [vmem:[#allocation5 + $0x10] sm:$0xff]
    %v66 = vld [vmem:[#allocation5 + $0x18] sm:$0xff]
    %v67 = vld [vmem:[#allocation5 + $0x20] sm:$0xff]
    %v68 = vld [vmem:[#allocation5 + $0x28] sm:$0xff]
    %v69 = vld [vmem:[#allocation5 + $0x30] sm:$0xff]
    %v70 = vld [vmem:[#allocation5 + $0x38] sm:$0xff]
    %v79 = vunpack.c.l.b16 %v63
    %v80 = vunpack.c.h.b16 %v63
    %v81 = vunpack.c.l.b16 %v64
    %v82 = vunpack.c.h.b16 %v64
    %v83 = vunpack.c.l.b16 %v65
    %v84 = vunpack.c.h.b16 %v65
    %v85 = vunpack.c.l.b16 %v66
    %v86 = vunpack.c.h.b16 %v66
    %v87 = vunpack.c.l.b16 %v67
    %v88 = vunpack.c.h.b16 %v67
    %v89 = vunpack.c.l.b16 %v68
    %v90 = vunpack.c.h.b16 %v68
    %v91 = vunpack.c.l.b16 %v69
    %v92 = vunpack.c.h.b16 %v69
    %v93 = vunpack.c.l.b16 %v70
    %v94 = vunpack.c.h.b16 %v70
    %v95 = vpack.c.b16 %v81, %v79
    %v96 = vpack.c.b16 %v82, %v80
    %v97 = vpack.c.b16 %v85, %v83
    %v98 = vpack.c.b16 %v86, %v84
    %v99 = vpack.c.b16 %v89, %v87
    %v100 = vpack.c.b16 %v90, %v88
    %v101 = vpack.c.b16 %v93, %v91
    %v102 = vpack.c.b16 %v94, %v92
    %vm111 = vcmask 523264
    %v113 = vsel %vm111, %v62, 0
    %115 = vmatprep.subr.bf16.mxu0 %v96
    %116 = vmatpush1.bf16.msra.mxu0 %v95
    %117 = vmatprep.subr.bf16.mxu0 %v98
    %118 = vmatpush1.bf16.msra.mxu0 %v97
    %119 = vmatprep.subr.bf16.mxu0 %v100
    %120 = vmatpush1.bf16.msra.mxu0 %v99
    %121 = vmatprep.subr.bf16.mxu0 %v102
    %122 = vmatpush1.bf16.msra.mxu0 %v101
    %123 = vmatprep.subr.bf16.mxu0 0
    %124 = vmatpush1.bf16.msra.mxu0 0
    %125 = vmatprep.subr.bf16.mxu0 0
    %126 = vmatpush1.bf16.msra.mxu0 0
    %127 = vmatprep.subr.bf16.mxu0 0
    %128 = vmatpush1.bf16.msra.mxu0 0
    %129 = vmatprep.subr.bf16.mxu0 0
    %130 = vmatpush1.bf16.msra.mxu0 0
    %131 = vmatprep.subr.bf16.mxu0 0
    %132 = vmatpush1.bf16.msra.mxu0 0
    %133 = vmatprep.subr.bf16.mxu0 0
    %134 = vmatpush1.bf16.msra.mxu0 0
    %135 = vmatprep.subr.bf16.mxu0 0
    %136 = vmatpush1.bf16.msra.mxu0 0
    %137 = vmatprep.subr.bf16.mxu0 0
    %138 = vmatpush1.bf16.msra.mxu0 0
    %139 = vmatprep.subr.bf16.mxu0 0
    %140 = vmatpush1.bf16.msra.mxu0 0
    %141 = vmatprep.subr.bf16.mxu0 0
    %142 = vmatpush1.bf16.msra.mxu0 0
    %143 = vmatprep.subr.bf16.mxu0 0
    %144 = vmatpush1.bf16.msra.mxu0 0
    %145 = vmatprep.subr.bf16.mxu0 0
    %146 = vmatpush1.bf16.msra.mxu0 0
    %147 = vmatprep.mubr.bf16.mxu0 0
    %148 = vmatmul.mubr.bf16.gmra.mrb[0].mxu0 %v113
    %v149 = vpop.f32.mrb[0].mxu0
    %v150 = vadd.f32 0.0, %v149
    %v151 = vpop.f32.mrb[0].mxu0
    %v152 = vadd.f32 0.0, %v151
    %v153 = vpop.f32.mrb[0].mxu0
    %v154 = vadd.f32 0.0, %v153
    %v155 = vpop.f32.mrb[0].mxu0
    %v156 = vadd.f32 0.0, %v155
    %157 = vdwg.mxu0
    %v158 = vld [vmem:[#allocation7] sm:$0xf]
    %v159 = vld [vmem:[#allocation7 + $0x4] sm:$0xf]
    %v160 = vld [vmem:[#allocation7 + $0x8] sm:$0xf]
    %v161 = vld [vmem:[#allocation7 + $0xc] sm:$0xf]
    %v162 = vld [vmem:[#allocation7 + $0x10] sm:$0xf]
    %v163 = vld [vmem:[#allocation7 + $0x14] sm:$0xf]
    %v164 = vld [vmem:[#allocation7 + $0x18] sm:$0xf]
    %v165 = vld [vmem:[#allocation7 + $0x1c] sm:$0xf]
    %v166 = vld [vmem:[%s3] sm:$0x1]
    %v167 = vlaneseq
    %v168 = vshrl.u32 %v167, 7
    %v169 = vlaneseq
    %v170 = vand.u32 %v169, 127
    %vm171 = vcmp.ge.s32.totalorder %v168, %v170
    %v172 = vpack.c.bf16 %v150, %v150
    %v173 = vpack.c.bf16 %v152, %v152
    %175 = vrot.lane.b32.xlu0 %v172, 64
    %v176 = vpop.permute.xlu0 %175
    %vm177 = vcmask 130048
    %v179 = vsel %vm177, %v172, 0
    %v182 = vsel %vm177, %v176, 0
    %184 = vmatprep.subr.bf16.mxu0 0
    %185 = vmatpush1.bf16.xpose.msra.mxu0 %v182
    %186 = vmatprep.subr.bf16.mxu0 0
    %187 = vmatpush1.bf16.xpose.msra.mxu0 0
    %188 = vmatprep.subr.bf16.mxu0 0
    %189 = vmatpush1.bf16.xpose.msra.mxu0 0
    %190 = vmatprep.subr.bf16.mxu0 0
    %191 = vmatpush1.bf16.xpose.msra.mxu0 0
    %192 = vmatprep.subr.bf16.mxu0 0
    %193 = vmatpush1.bf16.xpose.msra.mxu0 0
    %194 = vmatprep.subr.bf16.mxu0 0
    %195 = vmatpush1.bf16.xpose.msra.mxu0 0
    %196 = vmatprep.subr.bf16.mxu0 0
    %197 = vmatpush1.bf16.xpose.msra.mxu0 0
    %198 = vmatprep.subr.bf16.mxu0 0
    %199 = vmatpush1.bf16.xpose.msra.mxu0 0
    %200 = vmatprep.subr.bf16.mxu0 0
    %201 = vmatpush1.bf16.xpose.msra.mxu0 0
    %202 = vmatprep.subr.bf16.mxu0 0
    %203 = vmatpush1.bf16.xpose.msra.mxu0 0
    %204 = vmatprep.subr.bf16.mxu0 0
    %205 = vmatpush1.bf16.xpose.msra.mxu0 0
    %206 = vmatprep.subr.bf16.mxu0 0
    %207 = vmatpush1.bf16.xpose.msra.mxu0 0
    %208 = vmatprep.subr.bf16.mxu0 0
    %209 = vmatpush1.bf16.xpose.msra.mxu0 0
    %210 = vmatprep.subr.bf16.mxu0 0
    %211 = vmatpush1.bf16.xpose.msra.mxu0 0
    %212 = vmatprep.subr.bf16.mxu0 0
    %213 = vmatpush1.bf16.xpose.msra.mxu0 0
    %214 = vmatprep.subr.bf16.mxu0 0
    %215 = vmatpush1.bf16.xpose.msra.mxu0 0
    %216 = vmatprep.mubr.bf16.mxu0 0
    %217 = vmatmul.mubr.bf16.gmra.mrb[0].mxu0 %v179
    %v218 = vpop.f32.mrb[0].mxu0
    %v219 = vadd.f32 0.0, %v218
    %v220 = vpop.f32.mrb[0].mxu0
    %v221 = vpop.f32.mrb[0].mxu0
    %v222 = vpop.f32.mrb[0].mxu0
    %223 = vdwg.mxu0
    %v224 = vsel %vm171, %v219, -1e+30
    %vm225 = vcmask 64512
    %v226 = vsel %vm225, %v224, -inf
    %227 = vmax.xlane.f32.xlu0 %v226
    %v228 = vpop.xlane.xlu0 %227
    %v229 = vsub.f32 %v224, %v228
    %v230 = vmul.f32 %v229, 1.442695
    %v231 = vpow.pop %v230
    %v232 = vsel %vm225, %v231, 0.0
    %233 = vadd.xlane.f32.xlu0 %v232
    %v234 = vpop.xlane.xlu0 %233
    %v235 = vrcp.pop %v234
    %v236 = vmul.f32 %v231, %v235
    %v237 = vpack.c.bf16 %v236, %v236
    %v239 = vsel %vm225, %v237, 0
    %vm241 = vcmask 1043456
    %v243 = vsel %vm241, %v173, 0
    %245 = vmatprep.subr.bf16.mxu0 0
    %246 = vmatpush1.bf16.msra.mxu0 %v243
    %247 = vmatprep.subr.bf16.mxu0 0
    %248 = vmatpush1.bf16.msra.mxu0 0
    %249 = vmatprep.subr.bf16.mxu0 0
    %250 = vmatpush1.bf16.msra.mxu0 0
    %251 = vmatprep.subr.bf16.mxu0 0
    %252 = vmatpush1.bf16.msra.mxu0 0
    %253 = vmatprep.subr.bf16.mxu0 0
    %254 = vmatpush1.bf16.msra.mxu0 0
    %255 = vmatprep.subr.bf16.mxu0 0
    %256 = vmatpush1.bf16.msra.mxu0 0
    %257 = vmatprep.subr.bf16.mxu0 0
    %258 = vmatpush1.bf16.msra.mxu0 0
    %259 = vmatprep.subr.bf16.mxu0 0
    %260 = vmatpush1.bf16.msra.mxu0 0
    %261 = vmatprep.subr.bf16.mxu0 0
    %262 = vmatpush1.bf16.msra.mxu0 0
    %263 = vmatprep.subr.bf16.mxu0 0
    %264 = vmatpush1.bf16.msra.mxu0 0
    %265 = vmatprep.subr.bf16.mxu0 0
    %266 = vmatpush1.bf16.msra.mxu0 0
    %267 = vmatprep.subr.bf16.mxu0 0
    %268 = vmatpush1.bf16.msra.mxu0 0
    %269 = vmatprep.subr.bf16.mxu0 0
    %270 = vmatpush1.bf16.msra.mxu0 0
    %271 = vmatprep.subr.bf16.mxu0 0
    %272 = vmatpush1.bf16.msra.mxu0 0
    %273 = vmatprep.subr.bf16.mxu0 0
    %274 = vmatpush1.bf16.msra.mxu0 0
    %275 = vmatprep.subr.bf16.mxu0 0
    %276 = vmatpush1.bf16.msra.mxu0 0
    %277 = vmatprep.mubr.bf16.mxu0 0
    %278 = vmatmul.mubr.bf16.gmra.mrb[0].mxu0 %v239
    %v279 = vpop.f32.mrb[0].mxu0
    %v280 = vadd.f32 0.0, %v279
    %v281 = vpop.f32.mrb[0].mxu0
    %v282 = vpop.f32.mrb[0].mxu0
    %v283 = vpop.f32.mrb[0].mxu0
    %284 = vdwg.mxu0
    %v285 = vpack.c.bf16 %v280, %v280
    %286 = vrot.lane.b32.xlu0 %v172, 112
    %v287 = vpop.permute.xlu0 %286
    %288 = vrot.lane.b32.xlu0 %v172, 48
    %v289 = vpop.permute.xlu0 %288
    %v291 = vsel %vm177, %v287, 0
    %v294 = vsel %vm177, %v289, 0
    %296 = vmatprep.subr.bf16.mxu0 0
    %297 = vmatpush1.bf16.xpose.msra.mxu0 %v294
    %298 = vmatprep.subr.bf16.mxu0 0
    %299 = vmatpush1.bf16.xpose.msra.mxu0 0
    %300 = vmatprep.subr.bf16.mxu0 0
    %301 = vmatpush1.bf16.xpose.msra.mxu0 0
    %302 = vmatprep.subr.bf16.mxu0 0
    %303 = vmatpush1.bf16.xpose.msra.mxu0 0
    %304 = vmatprep.subr.bf16.mxu0 0
    %305 = vmatpush1.bf16.xpose.msra.mxu0 0
    %306 = vmatprep.subr.bf16.mxu0 0
    %307 = vmatpush1.bf16.xpose.msra.mxu0 0
    %308 = vmatprep.subr.bf16.mxu0 0
    %309 = vmatpush1.bf16.xpose.msra.mxu0 0
    %310 = vmatprep.subr.bf16.mxu0 0
    %311 = vmatpush1.bf16.xpose.msra.mxu0 0
    %312 = vmatprep.subr.bf16.mxu0 0
    %313 = vmatpush1.bf16.xpose.msra.mxu0 0
    %314 = vmatprep.subr.bf16.mxu0 0
    %315 = vmatpush1.bf16.xpose.msra.mxu0 0
    %316 = vmatprep.subr.bf16.mxu0 0
    %317 = vmatpush1.bf16.xpose.msra.mxu0 0
    %318 = vmatprep.subr.bf16.mxu0 0
    %319 = vmatpush1.bf16.xpose.msra.mxu0 0
    %320 = vmatprep.subr.bf16.mxu0 0
    %321 = vmatpush1.bf16.xpose.msra.mxu0 0
    %322 = vmatprep.subr.bf16.mxu0 0
    %323 = vmatpush1.bf16.xpose.msra.mxu0 0
    %324 = vmatprep.subr.bf16.mxu0 0
    %325 = vmatpush1.bf16.xpose.msra.mxu0 0
    %326 = vmatprep.subr.bf16.mxu0 0
    %327 = vmatpush1.bf16.xpose.msra.mxu0 0
    %328 = vmatprep.mubr.bf16.mxu0 0
    %329 = vmatmul.mubr.bf16.gmra.mrb[0].mxu0 %v291
    %v330 = vpop.f32.mrb[0].mxu0
    %v331 = vadd.f32 0.0, %v330
    %v332 = vpop.f32.mrb[0].mxu0
    %v333 = vpop.f32.mrb[0].mxu0
    %v334 = vpop.f32.mrb[0].mxu0
    %335 = vdwg.mxu0
    %v336 = vsel %vm171, %v331, -1e+30
    %v337 = vsel %vm225, %v336, -inf
    %338 = vmax.xlane.f32.xlu0 %v337
    %v339 = vpop.xlane.xlu0 %338
    %v340 = vsub.f32 %v336, %v339
    %v341 = vmul.f32 %v340, 1.442695
    %v342 = vpow.pop %v341
    %v343 = vsel %vm225, %v342, 0.0
    %344 = vadd.xlane.f32.xlu0 %v343
    %v345 = vpop.xlane.xlu0 %344
    %v346 = vrcp.pop %v345
    %v347 = vmul.f32 %v342, %v346
    %v348 = vpack.c.bf16 %v347, %v347
    %350 = vrot.lane.b32.xlu0 %v173, 112
    %v351 = vpop.permute.xlu0 %350
    %v353 = vsel %vm225, %v348, 0
    %v356 = vsel %vm241, %v351, 0
    %358 = vmatprep.subr.bf16.mxu0 0
    %359 = vmatpush1.bf16.msra.mxu0 %v356
    %360 = vmatprep.subr.bf16.mxu0 0
    %361 = vmatpush1.bf16.msra.mxu0 0
    %362 = vmatprep.subr.bf16.mxu0 0
    %363 = vmatpush1.bf16.msra.mxu0 0
    %364 = vmatprep.subr.bf16.mxu0 0
    %365 = vmatpush1.bf16.msra.mxu0 0
    %366 = vmatprep.subr.bf16.mxu0 0
    %367 = vmatpush1.bf16.msra.mxu0 0
    %368 = vmatprep.subr.bf16.mxu0 0
    %369 = vmatpush1.bf16.msra.mxu0 0
    %370 = vmatprep.subr.bf16.mxu0 0
    %371 = vmatpush1.bf16.msra.mxu0 0
    %372 = vmatprep.subr.bf16.mxu0 0
    %373 = vmatpush1.bf16.msra.mxu0 0
    %374 = vmatprep.subr.bf16.mxu0 0
    %375 = vmatpush1.bf16.msra.mxu0 0
    %376 = vmatprep.subr.bf16.mxu0 0
    %377 = vmatpush1.bf16.msra.mxu0 0
    %378 = vmatprep.subr.bf16.mxu0 0
    %379 = vmatpush1.bf16.msra.mxu0 0
    %380 = vmatprep.subr.bf16.mxu0 0
    %381 = vmatpush1.bf16.msra.mxu0 0
    %382 = vmatprep.subr.bf16.mxu0 0
    %383 = vmatpush1.bf16.msra.mxu0 0
    %384 = vmatprep.subr.bf16.mxu0 0
    %385 = vmatpush1.bf16.msra.mxu0 0
    %386 = vmatprep.subr.bf16.mxu0 0
    %387 = vmatpush1.bf16.msra.mxu0 0
    %388 = vmatprep.subr.bf16.mxu0 0
    %389 = vmatpush1.bf16.msra.mxu0 0
    %390 = vmatprep.mubr.bf16.mxu0 0
    %391 = vmatmul.mubr.bf16.gmra.mrb[0].mxu0 %v353
    %v392 = vpop.f32.mrb[0].mxu0
    %v393 = vadd.f32 0.0, %v392
    %v394 = vpop.f32.mrb[0].mxu0
    %v395 = vpop.f32.mrb[0].mxu0
    %v396 = vpop.f32.mrb[0].mxu0
    %397 = vdwg.mxu0
    %v398 = vpack.c.bf16 %v393, %v393
    %v401 = vunpack.c.l.b16 %v160
    %v402 = vunpack.c.l.b16 %v161
    %v403 = vpack.c.b16 %v402, %v401
    %v406 = vsel %vm177, %v398, 0
    %408 = vmatprep.subr.bf16.mxu0 0
    %409 = vmatpush1.bf16.msra.mxu0 %v403
    %410 = vmatprep.subr.bf16.mxu0 0
    %411 = vmatpush1.bf16.msra.mxu0 0
    %412 = vmatprep.subr.bf16.mxu0 0
    %413 = vmatpush1.bf16.msra.mxu0 0
    %414 = vmatprep.subr.bf16.mxu0 0
    %415 = vmatpush1.bf16.msra.mxu0 0
    %416 = vmatprep.subr.bf16.mxu0 0
    %417 = vmatpush1.bf16.msra.mxu0 0
    %418 = vmatprep.subr.bf16.mxu0 0
    %419 = vmatpush1.bf16.msra.mxu0 0
    %420 = vmatprep.subr.bf16.mxu0 0
    %421 = vmatpush1.bf16.msra.mxu0 0
    %422 = vmatprep.subr.bf16.mxu0 0
    %423 = vmatpush1.bf16.msra.mxu0 0
    %424 = vmatprep.subr.bf16.mxu0 0
    %425 = vmatpush1.bf16.msra.mxu0 0
    %426 = vmatprep.subr.bf16.mxu0 0
    %427 = vmatpush1.bf16.msra.mxu0 0
    %428 = vmatprep.subr.bf16.mxu0 0
    %429 = vmatpush1.bf16.msra.mxu0 0
    %430 = vmatprep.subr.bf16.mxu0 0
    %431 = vmatpush1.bf16.msra.mxu0 0
    %432 = vmatprep.subr.bf16.mxu0 0
    %433 = vmatpush1.bf16.msra.mxu0 0
    %434 = vmatprep.subr.bf16.mxu0 0
    %435 = vmatpush1.bf16.msra.mxu0 0
    %436 = vmatprep.subr.bf16.mxu0 0
    %437 = vmatpush1.bf16.msra.mxu0 0
    %438 = vmatprep.subr.bf16.mxu0 0
    %439 = vmatpush1.bf16.msra.mxu0 0
    %440 = vmatprep.mubr.bf16.mxu0 0
    %441 = vmatmul.mubr.bf16.gmra.mrb[0].mxu0 %v406
    %v442 = vpop.f32.mrb[0].mxu0
    %v443 = vadd.f32 0.0, %v442
    %v444 = vpop.f32.mrb[0].mxu0
    %v445 = vpop.f32.mrb[0].mxu0
    %v446 = vpop.f32.mrb[0].mxu0
    %447 = vdwg.mxu0
    %v450 = vunpack.c.l.b16 %v158
    %v451 = vunpack.c.l.b16 %v159
    %v452 = vpack.c.b16 %v451, %v450
    %v455 = vsel %vm177, %v285, 0
    %457 = vmatprep.subr.bf16.mxu0 0
    %458 = vmatpush1.bf16.msra.mxu0 %v452
    %459 = vmatprep.subr.bf16.mxu0 0
    %460 = vmatpush1.bf16.msra.mxu0 0
    %461 = vmatprep.subr.bf16.mxu0 0
    %462 = vmatpush1.bf16.msra.mxu0 0
    %463 = vmatprep.subr.bf16.mxu0 0
    %464 = vmatpush1.bf16.msra.mxu0 0
    %465 = vmatprep.subr.bf16.mxu0 0
    %466 = vmatpush1.bf16.msra.mxu0 0
    %467 = vmatprep.subr.bf16.mxu0 0
    %468 = vmatpush1.bf16.msra.mxu0 0
    %469 = vmatprep.subr.bf16.mxu0 0
    %470 = vmatpush1.bf16.msra.mxu0 0
    %471 = vmatprep.subr.bf16.mxu0 0
    %472 = vmatpush1.bf16.msra.mxu0 0
    %473 = vmatprep.subr.bf16.mxu0 0
    %474 = vmatpush1.bf16.msra.mxu0 0
    %475 = vmatprep.subr.bf16.mxu0 0
    %476 = vmatpush1.bf16.msra.mxu0 0
    %477 = vmatprep.subr.bf16.mxu0 0
    %478 = vmatpush1.bf16.msra.mxu0 0
    %479 = vmatprep.subr.bf16.mxu0 0
    %480 = vmatpush1.bf16.msra.mxu0 0
    %481 = vmatprep.subr.bf16.mxu0 0
    %482 = vmatpush1.bf16.msra.mxu0 0
    %483 = vmatprep.subr.bf16.mxu0 0
    %484 = vmatpush1.bf16.msra.mxu0 0
    %485 = vmatprep.subr.bf16.mxu0 0
    %486 = vmatpush1.bf16.msra.mxu0 0
    %487 = vmatprep.subr.bf16.mxu0 0
    %488 = vmatpush1.bf16.msra.mxu0 0
    %489 = vmatprep.mubr.bf16.mxu0 0
    %490 = vmatmul.mubr.bf16.gmra.mrb[0].mxu0 %v455
    %v491 = vpop.f32.mrb[0].mxu0
    %v492 = vadd.f32 %v443, %v491
    %v493 = vpop.f32.mrb[0].mxu0
    %v494 = vpop.f32.mrb[0].mxu0
    %v495 = vpop.f32.mrb[0].mxu0
    %496 = vdwg.mxu0
    %497 = vrot.lane.b32.xlu0 %v172, 96
    %v498 = vpop.permute.xlu0 %497
    %499 = vrot.lane.b32.xlu0 %v172, 32
    %v500 = vpop.permute.xlu0 %499
    %v502 = vsel %vm177, %v498, 0
    %v505 = vsel %vm177, %v500, 0
    %507 = vmatprep.subr.bf16.mxu0 0
    %508 = vmatpush1.bf16.xpose.msra.mxu0 %v505
    %509 = vmatprep.subr.bf16.mxu0 0
    %510 = vmatpush1.bf16.xpose.msra.mxu0 0
    %511 = vmatprep.subr.bf16.mxu0 0
    %512 = vmatpush1.bf16.xpose.msra.mxu0 0
    %513 = vmatprep.subr.bf16.mxu0 0
    %514 = vmatpush1.bf16.xpose.msra.mxu0 0
    %515 = vmatprep.subr.bf16.mxu0 0
    %516 = vmatpush1.bf16.xpose.msra.mxu0 0
    %517 = vmatprep.subr.bf16.mxu0 0
    %518 = vmatpush1.bf16.xpose.msra.mxu0 0
    %519 = vmatprep.subr.bf16.mxu0 0
    %520 = vmatpush1.bf16.xpose.msra.mxu0 0
    %521 = vmatprep.subr.bf16.mxu0 0
    %522 = vmatpush1.bf16.xpose.msra.mxu0 0
    %523 = vmatprep.subr.bf16.mxu0 0
    %524 = vmatpush1.bf16.xpose.msra.mxu0 0
    %525 = vmatprep.subr.bf16.mxu0 0
    %526 = vmatpush1.bf16.xpose.msra.mxu0 0
    %527 = vmatprep.subr.bf16.mxu0 0
    %528 = vmatpush1.bf16.xpose.msra.mxu0 0
    %529 = vmatprep.subr.bf16.mxu0 0
    %530 = vmatpush1.bf16.xpose.msra.mxu0 0
    %531 = vmatprep.subr.bf16.mxu0 0
    %532 = vmatpush1.bf16.xpose.msra.mxu0 0
    %533 = vmatprep.subr.bf16.mxu0 0
    %534 = vmatpush1.bf16.xpose.msra.mxu0 0
    %535 = vmatprep.subr.bf16.mxu0 0
    %536 = vmatpush1.bf16.xpose.msra.mxu0 0
    %537 = vmatprep.subr.bf16.mxu0 0
    %538 = vmatpush1.bf16.xpose.msra.mxu0 0
    %539 = vmatprep.mubr.bf16.mxu0 0
    %540 = vmatmul.mubr.bf16.gmra.mrb[0].mxu0 %v502
    %v541 = vpop.f32.mrb[0].mxu0
    %v542 = vadd.f32 0.0, %v541
    %v543 = vpop.f32.mrb[0].mxu0
    %v544 = vpop.f32.mrb[0].mxu0
    %v545 = vpop.f32.mrb[0].mxu0
    %546 = vdwg.mxu0
    %v547 = vsel %vm171, %v542, -1e+30
    %v548 = vsel %vm225, %v547, -inf
    %549 = vmax.xlane.f32.xlu0 %v548
    %v550 = vpop.xlane.xlu0 %549
    %v551 = vsub.f32 %v547, %v550
    %v552 = vmul.f32 %v551, 1.442695
    %v553 = vpow.pop %v552
    %v554 = vsel %vm225, %v553, 0.0
    %555 = vadd.xlane.f32.xlu0 %v554
    %v556 = vpop.xlane.xlu0 %555
    %v557 = vrcp.pop %v556
    %v558 = vmul.f32 %v553, %v557
    %v559 = vpack.c.bf16 %v558, %v558
    %560 = vrot.lane.b32.xlu0 %v173, 96
    %v561 = vpop.permute.xlu0 %560
    %v563 = vsel %vm225, %v559, 0
    %v566 = vsel %vm241, %v561, 0
    %568 = vmatprep.subr.bf16.mxu0 0
    %569 = vmatpush1.bf16.msra.mxu0 %v566
    %570 = vmatprep.subr.bf16.mxu0 0
    %571 = vmatpush1.bf16.msra.mxu0 0
    %572 = vmatprep.subr.bf16.mxu0 0
    %573 = vmatpush1.bf16.msra.mxu0 0
    %574 = vmatprep.subr.bf16.mxu0 0
    %575 = vmatpush1.bf16.msra.mxu0 0
    %576 = vmatprep.subr.bf16.mxu0 0
    %577 = vmatpush1.bf16.msra.mxu0 0
    %578 = vmatprep.subr.bf16.mxu0 0
    %579 = vmatpush1.bf16.msra.mxu0 0
    %580 = vmatprep.subr.bf16.mxu0 0
    %581 = vmatpush1.bf16.msra.mxu0 0
    %582 = vmatprep.subr.bf16.mxu0 0
    %583 = vmatpush1.bf16.msra.mxu0 0
    %584 = vmatprep.subr.bf16.mxu0 0
    %585 = vmatpush1.bf16.msra.mxu0 0
    %586 = vmatprep.subr.bf16.mxu0 0
    %587 = vmatpush1.bf16.msra.mxu0 0
    %588 = vmatprep.subr.bf16.mxu0 0
    %589 = vmatpush1.bf16.msra.mxu0 0
    %590 = vmatprep.subr.bf16.mxu0 0
    %591 = vmatpush1.bf16.msra.mxu0 0
    %592 = vmatprep.subr.bf16.mxu0 0
    %593 = vmatpush1.bf16.msra.mxu0 0
    %594 = vmatprep.subr.bf16.mxu0 0
    %595 = vmatpush1.bf16.msra.mxu0 0
    %596 = vmatprep.subr.bf16.mxu0 0
    %597 = vmatpush1.bf16.msra.mxu0 0
    %598 = vmatprep.subr.bf16.mxu0 0
    %599 = vmatpush1.bf16.msra.mxu0 0
    %600 = vmatprep.mubr.bf16.mxu0 0
    %601 = vmatmul.mubr.bf16.gmra.mrb[0].mxu0 %v563
    %v602 = vpop.f32.mrb[0].mxu0
    %v603 = vadd.f32 0.0, %v602
    %v604 = vpop.f32.mrb[0].mxu0
    %v605 = vpop.f32.mrb[0].mxu0
    %v606 = vpop.f32.mrb[0].mxu0
    %607 = vdwg.mxu0
    %v608 = vpack.c.bf16 %v603, %v603
    %v611 = vunpack.c.l.b16 %v162
    %v612 = vunpack.c.l.b16 %v163
    %v613 = vpack.c.b16 %v612, %v611
    %v616 = vsel %vm177, %v608, 0
    %618 = vmatprep.subr.bf16.mxu0 0
    %619 = vmatpush1.bf16.msra.mxu0 %v613
    %620 = vmatprep.subr.bf16.mxu0 0
    %621 = vmatpush1.bf16.msra.mxu0 0
    %622 = vmatprep.subr.bf16.mxu0 0
    %623 = vmatpush1.bf16.msra.mxu0 0
    %624 = vmatprep.subr.bf16.mxu0 0
    %625 = vmatpush1.bf16.msra.mxu0 0
    %626 = vmatprep.subr.bf16.mxu0 0
    %627 = vmatpush1.bf16.msra.mxu0 0
    %628 = vmatprep.subr.bf16.mxu0 0
    %629 = vmatpush1.bf16.msra.mxu0 0
    %630 = vmatprep.subr.bf16.mxu0 0
    %631 = vmatpush1.bf16.msra.mxu0 0
    %632 = vmatprep.subr.bf16.mxu0 0
    %633 = vmatpush1.bf16.msra.mxu0 0
    %634 = vmatprep.subr.bf16.mxu0 0
    %635 = vmatpush1.bf16.msra.mxu0 0
    %636 = vmatprep.subr.bf16.mxu0 0
    %637 = vmatpush1.bf16.msra.mxu0 0
    %638 = vmatprep.subr.bf16.mxu0 0
    %639 = vmatpush1.bf16.msra.mxu0 0
    %640 = vmatprep.subr.bf16.mxu0 0
    %641 = vmatpush1.bf16.msra.mxu0 0
    %642 = vmatprep.subr.bf16.mxu0 0
    %643 = vmatpush1.bf16.msra.mxu0 0
    %644 = vmatprep.subr.bf16.mxu0 0
    %645 = vmatpush1.bf16.msra.mxu0 0
    %646 = vmatprep.subr.bf16.mxu0 0
    %647 = vmatpush1.bf16.msra.mxu0 0
    %648 = vmatprep.subr.bf16.mxu0 0
    %649 = vmatpush1.bf16.msra.mxu0 0
    %650 = vmatprep.mubr.bf16.mxu0 0
    %651 = vmatmul.mubr.bf16.gmra.mrb[0].mxu0 %v616
    %v652 = vpop.f32.mrb[0].mxu0
    %v653 = vadd.f32 0.0, %v652
    %v654 = vpop.f32.mrb[0].mxu0
    %v655 = vpop.f32.mrb[0].mxu0
    %v656 = vpop.f32.mrb[0].mxu0
    %657 = vdwg.mxu0
    %v658 = vadd.f32 %v492, %v653
    %659 = vrot.lane.b32.xlu0 %v172, 80
    %v660 = vpop.permute.xlu0 %659
    %661 = vrot.lane.b32.xlu0 %v172, 16
    %v662 = vpop.permute.xlu0 %661
    %v664 = vsel %vm177, %v660, 0
    %v667 = vsel %vm177, %v662, 0
    %669 = vmatprep.subr.bf16.mxu0 0
    %670 = vmatpush1.bf16.xpose.msra.mxu0 %v667
    %671 = vmatprep.subr.bf16.mxu0 0
    %672 = vmatpush1.bf16.xpose.msra.mxu0 0
    %673 = vmatprep.subr.bf16.mxu0 0
    %674 = vmatpush1.bf16.xpose.msra.mxu0 0
    %675 = vmatprep.subr.bf16.mxu0 0
    %676 = vmatpush1.bf16.xpose.msra.mxu0 0
    %677 = vmatprep.subr.bf16.mxu0 0
    %678 = vmatpush1.bf16.xpose.msra.mxu0 0
    %679 = vmatprep.subr.bf16.mxu0 0
    %680 = vmatpush1.bf16.xpose.msra.mxu0 0
    %681 = vmatprep.subr.bf16.mxu0 0
    %682 = vmatpush1.bf16.xpose.msra.mxu0 0
    %683 = vmatprep.subr.bf16.mxu0 0
    %684 = vmatpush1.bf16.xpose.msra.mxu0 0
    %685 = vmatprep.subr.bf16.mxu0 0
    %686 = vmatpush1.bf16.xpose.msra.mxu0 0
    %687 = vmatprep.subr.bf16.mxu0 0
    %688 = vmatpush1.bf16.xpose.msra.mxu0 0
    %689 = vmatprep.subr.bf16.mxu0 0
    %690 = vmatpush1.bf16.xpose.msra.mxu0 0
    %691 = vmatprep.subr.bf16.mxu0 0
    %692 = vmatpush1.bf16.xpose.msra.mxu0 0
    %693 = vmatprep.subr.bf16.mxu0 0
    %694 = vmatpush1.bf16.xpose.msra.mxu0 0
    %695 = vmatprep.subr.bf16.mxu0 0
    %696 = vmatpush1.bf16.xpose.msra.mxu0 0
    %697 = vmatprep.subr.bf16.mxu0 0
    %698 = vmatpush1.bf16.xpose.msra.mxu0 0
    %699 = vmatprep.subr.bf16.mxu0 0
    %700 = vmatpush1.bf16.xpose.msra.mxu0 0
    %701 = vmatprep.mubr.bf16.mxu0 0
    %702 = vmatmul.mubr.bf16.gmra.mrb[0].mxu0 %v664
    %v703 = vpop.f32.mrb[0].mxu0
    %v704 = vadd.f32 0.0, %v703
    %v705 = vpop.f32.mrb[0].mxu0
    %v706 = vpop.f32.mrb[0].mxu0
    %v707 = vpop.f32.mrb[0].mxu0
    %708 = vdwg.mxu0
    %v709 = vsel %vm171, %v704, -1e+30
    %v710 = vsel %vm225, %v709, -inf
    %711 = vmax.xlane.f32.xlu0 %v710
    %v712 = vpop.xlane.xlu0 %711
    %v713 = vsub.f32 %v709, %v712
    %v714 = vmul.f32 %v713, 1.442695
    %v715 = vpow.pop %v714
    %v716 = vsel %vm225, %v715, 0.0
    %717 = vadd.xlane.f32.xlu0 %v716
    %v718 = vpop.xlane.xlu0 %717
    %v719 = vrcp.pop %v718
    %v720 = vmul.f32 %v715, %v719
    %v721 = vpack.c.bf16 %v720, %v720
    %722 = vrot.lane.b32.xlu0 %v173, 80
    %v723 = vpop.permute.xlu0 %722
    %v725 = vsel %vm225, %v721, 0
    %v728 = vsel %vm241, %v723, 0
    %730 = vmatprep.subr.bf16.mxu0 0
    %731 = vmatpush1.bf16.msra.mxu0 %v728
    %732 = vmatprep.subr.bf16.mxu0 0
    %733 = vmatpush1.bf16.msra.mxu0 0
    %734 = vmatprep.subr.bf16.mxu0 0
    %735 = vmatpush1.bf16.msra.mxu0 0
    %736 = vmatprep.subr.bf16.mxu0 0
    %737 = vmatpush1.bf16.msra.mxu0 0
    %738 = vmatprep.subr.bf16.mxu0 0
    %739 = vmatpush1.bf16.msra.mxu0 0
    %740 = vmatprep.subr.bf16.mxu0 0
    %741 = vmatpush1.bf16.msra.mxu0 0
    %742 = vmatprep.subr.bf16.mxu0 0
    %743 = vmatpush1.bf16.msra.mxu0 0
    %744 = vmatprep.subr.bf16.mxu0 0
    %745 = vmatpush1.bf16.msra.mxu0 0
    %746 = vmatprep.subr.bf16.mxu0 0
    %747 = vmatpush1.bf16.msra.mxu0 0
    %748 = vmatprep.subr.bf16.mxu0 0
    %749 = vmatpush1.bf16.msra.mxu0 0
    %750 = vmatprep.subr.bf16.mxu0 0
    %751 = vmatpush1.bf16.msra.mxu0 0
    %752 = vmatprep.subr.bf16.mxu0 0
    %753 = vmatpush1.bf16.msra.mxu0 0
    %754 = vmatprep.subr.bf16.mxu0 0
    %755 = vmatpush1.bf16.msra.mxu0 0
    %756 = vmatprep.subr.bf16.mxu0 0
    %757 = vmatpush1.bf16.msra.mxu0 0
    %758 = vmatprep.subr.bf16.mxu0 0
    %759 = vmatpush1.bf16.msra.mxu0 0
    %760 = vmatprep.subr.bf16.mxu0 0
    %761 = vmatpush1.bf16.msra.mxu0 0
    %762 = vmatprep.mubr.bf16.mxu0 0
    %763 = vmatmul.mubr.bf16.gmra.mrb[0].mxu0 %v725
    %v764 = vpop.f32.mrb[0].mxu0
    %v765 = vadd.f32 0.0, %v764
    %v766 = vpop.f32.mrb[0].mxu0
    %v767 = vpop.f32.mrb[0].mxu0
    %v768 = vpop.f32.mrb[0].mxu0
    %769 = vdwg.mxu0
    %v770 = vpack.c.bf16 %v765, %v765
    %v773 = vunpack.c.l.b16 %v164
    %v774 = vunpack.c.l.b16 %v165
    %v775 = vpack.c.b16 %v774, %v773
    %v778 = vsel %vm177, %v770, 0
    %780 = vmatprep.subr.bf16.mxu0 0
    %781 = vmatpush1.bf16.msra.mxu0 %v775
    %782 = vmatprep.subr.bf16.mxu0 0
    %783 = vmatpush1.bf16.msra.mxu0 0
    %784 = vmatprep.subr.bf16.mxu0 0
    %785 = vmatpush1.bf16.msra.mxu0 0
    %786 = vmatprep.subr.bf16.mxu0 0
    %787 = vmatpush1.bf16.msra.mxu0 0
    %788 = vmatprep.subr.bf16.mxu0 0
    %789 = vmatpush1.bf16.msra.mxu0 0
    %790 = vmatprep.subr.bf16.mxu0 0
    %791 = vmatpush1.bf16.msra.mxu0 0
    %792 = vmatprep.subr.bf16.mxu0 0
    %793 = vmatpush1.bf16.msra.mxu0 0
    %794 = vmatprep.subr.bf16.mxu0 0
    %795 = vmatpush1.bf16.msra.mxu0 0
    %796 = vmatprep.subr.bf16.mxu0 0
    %797 = vmatpush1.bf16.msra.mxu0 0
    %798 = vmatprep.subr.bf16.mxu0 0
    %799 = vmatpush1.bf16.msra.mxu0 0
    %800 = vmatprep.subr.bf16.mxu0 0
    %801 = vmatpush1.bf16.msra.mxu0 0
    %802 = vmatprep.subr.bf16.mxu0 0
    %803 = vmatpush1.bf16.msra.mxu0 0
    %804 = vmatprep.subr.bf16.mxu0 0
    %805 = vmatpush1.bf16.msra.mxu0 0
    %806 = vmatprep.subr.bf16.mxu0 0
    %807 = vmatpush1.bf16.msra.mxu0 0
    %808 = vmatprep.subr.bf16.mxu0 0
    %809 = vmatpush1.bf16.msra.mxu0 0
    %810 = vmatprep.subr.bf16.mxu0 0
    %811 = vmatpush1.bf16.msra.mxu0 0
    %812 = vmatprep.mubr.bf16.mxu0 0
    %813 = vmatmul.mubr.bf16.gmra.mrb[0].mxu0 %v778
    %v814 = vpop.f32.mrb[0].mxu0
    %v815 = vadd.f32 0.0, %v814
    %v816 = vpop.f32.mrb[0].mxu0
    %v817 = vpop.f32.mrb[0].mxu0
    %v818 = vpop.f32.mrb[0].mxu0
    %819 = vdwg.mxu0
    %v820 = vadd.f32 %v658, %v815
    %v822 = vlaneseq
    %v823 = vshrl.u32 %v822, 7
    %v824 = vsub.s32 0, %v823
    %v825 = vrot.slane %v166, %v824
    %v827 = vadd.f32 %v820, %v825
    %828 = vst.msk [vmem:[#allocation8] sm:$0xff] %vm111, %v827
    %v829 = vpack.c.bf16 %v154, %v154
    %v830 = vpack.c.bf16 %v156, %v156
    %832 = vrot.lane.b32.xlu0 %v829, 64
    %v833 = vpop.permute.xlu0 %832
    %v835 = vsel %vm177, %v829, 0
    %v838 = vsel %vm177, %v833, 0
    %840 = vmatprep.subr.bf16.mxu0 0
    %841 = vmatpush1.bf16.xpose.msra.mxu0 %v838
    %842 = vmatprep.subr.bf16.mxu0 0
    %843 = vmatpush1.bf16.xpose.msra.mxu0 0
    %844 = vmatprep.subr.bf16.mxu0 0
    %845 = vmatpush1.bf16.xpose.msra.mxu0 0
    %846 = vmatprep.subr.bf16.mxu0 0
    %847 = vmatpush1.bf16.xpose.msra.mxu0 0
    %848 = vmatprep.subr.bf16.mxu0 0
    %849 = vmatpush1.bf16.xpose.msra.mxu0 0
    %850 = vmatprep.subr.bf16.mxu0 0
    %851 = vmatpush1.bf16.xpose.msra.mxu0 0
    %852 = vmatprep.subr.bf16.mxu0 0
    %853 = vmatpush1.bf16.xpose.msra.mxu0 0
    %854 = vmatprep.subr.bf16.mxu0 0
    %855 = vmatpush1.bf16.xpose.msra.mxu0 0
    %856 = vmatprep.subr.bf16.mxu0 0
    %857 = vmatpush1.bf16.xpose.msra.mxu0 0
    %858 = vmatprep.subr.bf16.mxu0 0
    %859 = vmatpush1.bf16.xpose.msra.mxu0 0
    %860 = vmatprep.subr.bf16.mxu0 0
    %861 = vmatpush1.bf16.xpose.msra.mxu0 0
    %862 = vmatprep.subr.bf16.mxu0 0
    %863 = vmatpush1.bf16.xpose.msra.mxu0 0
    %864 = vmatprep.subr.bf16.mxu0 0
    %865 = vmatpush1.bf16.xpose.msra.mxu0 0
    %866 = vmatprep.subr.bf16.mxu0 0
    %867 = vmatpush1.bf16.xpose.msra.mxu0 0
    %868 = vmatprep.subr.bf16.mxu0 0
    %869 = vmatpush1.bf16.xpose.msra.mxu0 0
    %870 = vmatprep.subr.bf16.mxu0 0
    %871 = vmatpush1.bf16.xpose.msra.mxu0 0
    %872 = vmatprep.mubr.bf16.mxu0 0
    %873 = vmatmul.mubr.bf16.gmra.mrb[0].mxu0 %v835
    %v874 = vpop.f32.mrb[0].mxu0
    %v875 = vadd.f32 0.0, %v874
    %v876 = vpop.f32.mrb[0].mxu0
    %v877 = vpop.f32.mrb[0].mxu0
    %v878 = vpop.f32.mrb[0].mxu0
    %879 = vdwg.mxu0
    %v880 = vsel %vm171, %v875, -1e+30
    %v881 = vsel %vm225, %v880, -inf
    %882 = vmax.xlane.f32.xlu0 %v881
    %v883 = vpop.xlane.xlu0 %882
    %v884 = vsub.f32 %v880, %v883
    %v885 = vmul.f32 %v884, 1.442695
    %v886 = vpow.pop %v885
    %v887 = vsel %vm225, %v886, 0.0
    %888 = vadd.xlane.f32.xlu0 %v887
    %v889 = vpop.xlane.xlu0 %888
    %v890 = vrcp.pop %v889
    %v891 = vmul.f32 %v886, %v890
    %v892 = vpack.c.bf16 %v891, %v891
    %v894 = vsel %vm225, %v892, 0
    %v897 = vsel %vm241, %v830, 0
    %899 = vmatprep.subr.bf16.mxu0 0
    %900 = vmatpush1.bf16.msra.mxu0 %v897
    %901 = vmatprep.subr.bf16.mxu0 0
    %902 = vmatpush1.bf16.msra.mxu0 0
    %903 = vmatprep.subr.bf16.mxu0 0
    %904 = vmatpush1.bf16.msra.mxu0 0
    %905 = vmatprep.subr.bf16.mxu0 0
    %906 = vmatpush1.bf16.msra.mxu0 0
    %907 = vmatprep.subr.bf16.mxu0 0
    %908 = vmatpush1.bf16.msra.mxu0 0
    %909 = vmatprep.subr.bf16.mxu0 0
    %910 = vmatpush1.bf16.msra.mxu0 0
    %911 = vmatprep.subr.bf16.mxu0 0
    %912 = vmatpush1.bf16.msra.mxu0 0
    %913 = vmatprep.subr.bf16.mxu0 0
    %914 = vmatpush1.bf16.msra.mxu0 0
    %915 = vmatprep.subr.bf16.mxu0 0
    %916 = vmatpush1.bf16.msra.mxu0 0
    %917 = vmatprep.subr.bf16.mxu0 0
    %918 = vmatpush1.bf16.msra.mxu0 0
    %919 = vmatprep.subr.bf16.mxu0 0
    %920 = vmatpush1.bf16.msra.mxu0 0
    %921 = vmatprep.subr.bf16.mxu0 0
    %922 = vmatpush1.bf16.msra.mxu0 0
    %923 = vmatprep.subr.bf16.mxu0 0
    %924 = vmatpush1.bf16.msra.mxu0 0
    %925 = vmatprep.subr.bf16.mxu0 0
    %926 = vmatpush1.bf16.msra.mxu0 0
    %927 = vmatprep.subr.bf16.mxu0 0
    %928 = vmatpush1.bf16.msra.mxu0 0
    %929 = vmatprep.subr.bf16.mxu0 0
    %930 = vmatpush1.bf16.msra.mxu0 0
    %931 = vmatprep.mubr.bf16.mxu0 0
    %932 = vmatmul.mubr.bf16.gmra.mrb[0].mxu0 %v894
    %v933 = vpop.f32.mrb[0].mxu0
    %v934 = vadd.f32 0.0, %v933
    %v935 = vpop.f32.mrb[0].mxu0
    %v936 = vpop.f32.mrb[0].mxu0
    %v937 = vpop.f32.mrb[0].mxu0
    %938 = vdwg.mxu0
    %v939 = vpack.c.bf16 %v934, %v934
    %940 = vrot.lane.b32.xlu0 %v829, 112
    %v941 = vpop.permute.xlu0 %940
    %942 = vrot.lane.b32.xlu0 %v829, 48
    %v943 = vpop.permute.xlu0 %942
    %v945 = vsel %vm177, %v941, 0
    %v948 = vsel %vm177, %v943, 0
    %950 = vmatprep.subr.bf16.mxu0 0
    %951 = vmatpush1.bf16.xpose.msra.mxu0 %v948
    %952 = vmatprep.subr.bf16.mxu0 0
    %953 = vmatpush1.bf16.xpose.msra.mxu0 0
    %954 = vmatprep.subr.bf16.mxu0 0
    %955 = vmatpush1.bf16.xpose.msra.mxu0 0
    %956 = vmatprep.subr.bf16.mxu0 0
    %957 = vmatpush1.bf16.xpose.msra.mxu0 0
    %958 = vmatprep.subr.bf16.mxu0 0
    %959 = vmatpush1.bf16.xpose.msra.mxu0 0
    %960 = vmatprep.subr.bf16.mxu0 0
    %961 = vmatpush1.bf16.xpose.msra.mxu0 0
    %962 = vmatprep.subr.bf16.mxu0 0
    %963 = vmatpush1.bf16.xpose.msra.mxu0 0
    %964 = vmatprep.subr.bf16.mxu0 0
    %965 = vmatpush1.bf16.xpose.msra.mxu0 0
    %966 = vmatprep.subr.bf16.mxu0 0
    %967 = vmatpush1.bf16.xpose.msra.mxu0 0
    %968 = vmatprep.subr.bf16.mxu0 0
    %969 = vmatpush1.bf16.xpose.msra.mxu0 0
    %970 = vmatprep.subr.bf16.mxu0 0
    %971 = vmatpush1.bf16.xpose.msra.mxu0 0
    %972 = vmatprep.subr.bf16.mxu0 0
    %973 = vmatpush1.bf16.xpose.msra.mxu0 0
    %974 = vmatprep.subr.bf16.mxu0 0
    %975 = vmatpush1.bf16.xpose.msra.mxu0 0
    %976 = vmatprep.subr.bf16.mxu0 0
    %977 = vmatpush1.bf16.xpose.msra.mxu0 0
    %978 = vmatprep.subr.bf16.mxu0 0
    %979 = vmatpush1.bf16.xpose.msra.mxu0 0
    %980 = vmatprep.subr.bf16.mxu0 0
    %981 = vmatpush1.bf16.xpose.msra.mxu0 0
    %982 = vmatprep.mubr.bf16.mxu0 0
    %983 = vmatmul.mubr.bf16.gmra.mrb[0].mxu0 %v945
    %v984 = vpop.f32.mrb[0].mxu0
    %v985 = vadd.f32 0.0, %v984
    %v986 = vpop.f32.mrb[0].mxu0
    %v987 = vpop.f32.mrb[0].mxu0
    %v988 = vpop.f32.mrb[0].mxu0
    %989 = vdwg.mxu0
    %v990 = vsel %vm171, %v985, -1e+30
    %v991 = vsel %vm225, %v990, -inf
    %992 = vmax.xlane.f32.xlu0 %v991
    %v993 = vpop.xlane.xlu0 %992
    %v994 = vsub.f32 %v990, %v993
    %v995 = vmul.f32 %v994, 1.442695
    %v996 = vpow.pop %v995
    %v997 = vsel %vm225, %v996, 0.0
    %998 = vadd.xlane.f32.xlu0 %v997
    %v999 = vpop.xlane.xlu0 %998
    %v1000 = vrcp.pop %v999
    %v1001 = vmul.f32 %v996, %v1000
    %v1002 = vpack.c.bf16 %v1001, %v1001
    %1004 = vrot.lane.b32.xlu0 %v830, 112
    %v1005 = vpop.permute.xlu0 %1004
    %v1007 = vsel %vm225, %v1002, 0
    %v1010 = vsel %vm241, %v1005, 0
    %1012 = vmatprep.subr.bf16.mxu0 0
    %1013 = vmatpush1.bf16.msra.mxu0 %v1010
    %1014 = vmatprep.subr.bf16.mxu0 0
    %1015 = vmatpush1.bf16.msra.mxu0 0
    %1016 = vmatprep.subr.bf16.mxu0 0
    %1017 = vmatpush1.bf16.msra.mxu0 0
    %1018 = vmatprep.subr.bf16.mxu0 0
    %1019 = vmatpush1.bf16.msra.mxu0 0
    %1020 = vmatprep.subr.bf16.mxu0 0
    %1021 = vmatpush1.bf16.msra.mxu0 0
    %1022 = vmatprep.subr.bf16.mxu0 0
    %1023 = vmatpush1.bf16.msra.mxu0 0
    %1024 = vmatprep.subr.bf16.mxu0 0
    %1025 = vmatpush1.bf16.msra.mxu0 0
    %1026 = vmatprep.subr.bf16.mxu0 0
    %1027 = vmatpush1.bf16.msra.mxu0 0
    %1028 = vmatprep.subr.bf16.mxu0 0
    %1029 = vmatpush1.bf16.msra.mxu0 0
    %1030 = vmatprep.subr.bf16.mxu0 0
    %1031 = vmatpush1.bf16.msra.mxu0 0
    %1032 = vmatprep.subr.bf16.mxu0 0
    %1033 = vmatpush1.bf16.msra.mxu0 0
    %1034 = vmatprep.subr.bf16.mxu0 0
    %1035 = vmatpush1.bf16.msra.mxu0 0
    %1036 = vmatprep.subr.bf16.mxu0 0
    %1037 = vmatpush1.bf16.msra.mxu0 0
    %1038 = vmatprep.subr.bf16.mxu0 0
    %1039 = vmatpush1.bf16.msra.mxu0 0
    %1040 = vmatprep.subr.bf16.mxu0 0
    %1041 = vmatpush1.bf16.msra.mxu0 0
    %1042 = vmatprep.subr.bf16.mxu0 0
    %1043 = vmatpush1.bf16.msra.mxu0 0
    %1044 = vmatprep.mubr.bf16.mxu0 0
    %1045 = vmatmul.mubr.bf16.gmra.mrb[0].mxu0 %v1007
    %v1046 = vpop.f32.mrb[0].mxu0
    %v1047 = vadd.f32 0.0, %v1046
    %v1048 = vpop.f32.mrb[0].mxu0
    %v1049 = vpop.f32.mrb[0].mxu0
    %v1050 = vpop.f32.mrb[0].mxu0
    %1051 = vdwg.mxu0
    %v1052 = vpack.c.bf16 %v1047, %v1047
    %v1054 = vsel %vm177, %v1052, 0
    %1056 = vmatprep.subr.bf16.mxu0 0
    %1057 = vmatpush1.bf16.msra.mxu0 %v403
    %1058 = vmatprep.subr.bf16.mxu0 0
    %1059 = vmatpush1.bf16.msra.mxu0 0
    %1060 = vmatprep.subr.bf16.mxu0 0
    %1061 = vmatpush1.bf16.msra.mxu0 0
    %1062 = vmatprep.subr.bf16.mxu0 0
    %1063 = vmatpush1.bf16.msra.mxu0 0
    %1064 = vmatprep.subr.bf16.mxu0 0
    %1065 = vmatpush1.bf16.msra.mxu0 0
    %1066 = vmatprep.subr.bf16.mxu0 0
    %1067 = vmatpush1.bf16.msra.mxu0 0
    %1068 = vmatprep.subr.bf16.mxu0 0
    %1069 = vmatpush1.bf16.msra.mxu0 0
    %1070 = vmatprep.subr.bf16.mxu0 0
    %1071 = vmatpush1.bf16.msra.mxu0 0
    %1072 = vmatprep.subr.bf16.mxu0 0
    %1073 = vmatpush1.bf16.msra.mxu0 0
    %1074 = vmatprep.subr.bf16.mxu0 0
    %1075 = vmatpush1.bf16.msra.mxu0 0
    %1076 = vmatprep.subr.bf16.mxu0 0
    %1077 = vmatpush1.bf16.msra.mxu0 0
    %1078 = vmatprep.subr.bf16.mxu0 0
    %1079 = vmatpush1.bf16.msra.mxu0 0
    %1080 = vmatprep.subr.bf16.mxu0 0
    %1081 = vmatpush1.bf16.msra.mxu0 0
    %1082 = vmatprep.subr.bf16.mxu0 0
    %1083 = vmatpush1.bf16.msra.mxu0 0
    %1084 = vmatprep.subr.bf16.mxu0 0
    %1085 = vmatpush1.bf16.msra.mxu0 0
    %1086 = vmatprep.subr.bf16.mxu0 0
    %1087 = vmatpush1.bf16.msra.mxu0 0
    %1088 = vmatprep.mubr.bf16.mxu0 0
    %1089 = vmatmul.mubr.bf16.gmra.mrb[0].mxu0 %v1054
    %v1090 = vpop.f32.mrb[0].mxu0
    %v1091 = vadd.f32 0.0, %v1090
    %v1092 = vpop.f32.mrb[0].mxu0
    %v1093 = vpop.f32.mrb[0].mxu0
    %v1094 = vpop.f32.mrb[0].mxu0
    %1095 = vdwg.mxu0
    %v1097 = vsel %vm177, %v939, 0
    %1099 = vmatprep.subr.bf16.mxu0 0
    %1100 = vmatpush1.bf16.msra.mxu0 %v452
    %1101 = vmatprep.subr.bf16.mxu0 0
    %1102 = vmatpush1.bf16.msra.mxu0 0
    %1103 = vmatprep.subr.bf16.mxu0 0
    %1104 = vmatpush1.bf16.msra.mxu0 0
    %1105 = vmatprep.subr.bf16.mxu0 0
    %1106 = vmatpush1.bf16.msra.mxu0 0
    %1107 = vmatprep.subr.bf16.mxu0 0
    %1108 = vmatpush1.bf16.msra.mxu0 0
    %1109 = vmatprep.subr.bf16.mxu0 0
    %1110 = vmatpush1.bf16.msra.mxu0 0
    %1111 = vmatprep.subr.bf16.mxu0 0
    %1112 = vmatpush1.bf16.msra.mxu0 0
    %1113 = vmatprep.subr.bf16.mxu0 0
    %1114 = vmatpush1.bf16.msra.mxu0 0
    %1115 = vmatprep.subr.bf16.mxu0 0
    %1116 = vmatpush1.bf16.msra.mxu0 0
    %1117 = vmatprep.subr.bf16.mxu0 0
    %1118 = vmatpush1.bf16.msra.mxu0 0
    %1119 = vmatprep.subr.bf16.mxu0 0
    %1120 = vmatpush1.bf16.msra.mxu0 0
    %1121 = vmatprep.subr.bf16.mxu0 0
    %1122 = vmatpush1.bf16.msra.mxu0 0
    %1123 = vmatprep.subr.bf16.mxu0 0
    %1124 = vmatpush1.bf16.msra.mxu0 0
    %1125 = vmatprep.subr.bf16.mxu0 0
    %1126 = vmatpush1.bf16.msra.mxu0 0
    %1127 = vmatprep.subr.bf16.mxu0 0
    %1128 = vmatpush1.bf16.msra.mxu0 0
    %1129 = vmatprep.subr.bf16.mxu0 0
    %1130 = vmatpush1.bf16.msra.mxu0 0
    %1131 = vmatprep.mubr.bf16.mxu0 0
    %1132 = vmatmul.mubr.bf16.gmra.mrb[0].mxu0 %v1097
    %v1133 = vpop.f32.mrb[0].mxu0
    %v1134 = vadd.f32 %v1091, %v1133
    %v1135 = vpop.f32.mrb[0].mxu0
    %v1136 = vpop.f32.mrb[0].mxu0
    %v1137 = vpop.f32.mrb[0].mxu0
    %1138 = vdwg.mxu0
    %1139 = vrot.lane.b32.xlu0 %v829, 96
    %v1140 = vpop.permute.xlu0 %1139
    %1141 = vrot.lane.b32.xlu0 %v829, 32
    %v1142 = vpop.permute.xlu0 %1141
    %v1144 = vsel %vm177, %v1140, 0
    %v1147 = vsel %vm177, %v1142, 0
    %1149 = vmatprep.subr.bf16.mxu0 0
    %1150 = vmatpush1.bf16.xpose.msra.mxu0 %v1147
    %1151 = vmatprep.subr.bf16.mxu0 0
    %1152 = vmatpush1.bf16.xpose.msra.mxu0 0
    %1153 = vmatprep.subr.bf16.mxu0 0
    %1154 = vmatpush1.bf16.xpose.msra.mxu0 0
    %1155 = vmatprep.subr.bf16.mxu0 0
    %1156 = vmatpush1.bf16.xpose.msra.mxu0 0
    %1157 = vmatprep.subr.bf16.mxu0 0
    %1158 = vmatpush1.bf16.xpose.msra.mxu0 0
    %1159 = vmatprep.subr.bf16.mxu0 0
    %1160 = vmatpush1.bf16.xpose.msra.mxu0 0
    %1161 = vmatprep.subr.bf16.mxu0 0
    %1162 = vmatpush1.bf16.xpose.msra.mxu0 0
    %1163 = vmatprep.subr.bf16.mxu0 0
    %1164 = vmatpush1.bf16.xpose.msra.mxu0 0
    %1165 = vmatprep.subr.bf16.mxu0 0
    %1166 = vmatpush1.bf16.xpose.msra.mxu0 0
    %1167 = vmatprep.subr.bf16.mxu0 0
    %1168 = vmatpush1.bf16.xpose.msra.mxu0 0
    %1169 = vmatprep.subr.bf16.mxu0 0
    %1170 = vmatpush1.bf16.xpose.msra.mxu0 0
    %1171 = vmatprep.subr.bf16.mxu0 0
    %1172 = vmatpush1.bf16.xpose.msra.mxu0 0
    %1173 = vmatprep.subr.bf16.mxu0 0
    %1174 = vmatpush1.bf16.xpose.msra.mxu0 0
    %1175 = vmatprep.subr.bf16.mxu0 0
    %1176 = vmatpush1.bf16.xpose.msra.mxu0 0
    %1177 = vmatprep.subr.bf16.mxu0 0
    %1178 = vmatpush1.bf16.xpose.msra.mxu0 0
    %1179 = vmatprep.subr.bf16.mxu0 0
    %1180 = vmatpush1.bf16.xpose.msra.mxu0 0
    %1181 = vmatprep.mubr.bf16.mxu0 0
    %1182 = vmatmul.mubr.bf16.gmra.mrb[0].mxu0 %v1144
    %v1183 = vpop.f32.mrb[0].mxu0
    %v1184 = vadd.f32 0.0, %v1183
    %v1185 = vpop.f32.mrb[0].mxu0
    %v1186 = vpop.f32.mrb[0].mxu0
    %v1187 = vpop.f32.mrb[0].mxu0
    %1188 = vdwg.mxu0
    %v1189 = vsel %vm171, %v1184, -1e+30
    %v1190 = vsel %vm225, %v1189, -inf
    %1191 = vmax.xlane.f32.xlu0 %v1190
    %v1192 = vpop.xlane.xlu0 %1191
    %v1193 = vsub.f32 %v1189, %v1192
    %v1194 = vmul.f32 %v1193, 1.442695
    %v1195 = vpow.pop %v1194
    %v1196 = vsel %vm225, %v1195, 0.0
    %1197 = vadd.xlane.f32.xlu0 %v1196
    %v1198 = vpop.xlane.xlu0 %1197
    %v1199 = vrcp.pop %v1198
    %v1200 = vmul.f32 %v1195, %v1199
    %v1201 = vpack.c.bf16 %v1200, %v1200
    %1202 = vrot.lane.b32.xlu0 %v830, 96
    %v1203 = vpop.permute.xlu0 %1202
    %v1205 = vsel %vm225, %v1201, 0
    %v1208 = vsel %vm241, %v1203, 0
    %1210 = vmatprep.subr.bf16.mxu0 0
    %1211 = vmatpush1.bf16.msra.mxu0 %v1208
    %1212 = vmatprep.subr.bf16.mxu0 0
    %1213 = vmatpush1.bf16.msra.mxu0 0
    %1214 = vmatprep.subr.bf16.mxu0 0
    %1215 = vmatpush1.bf16.msra.mxu0 0
    %1216 = vmatprep.subr.bf16.mxu0 0
    %1217 = vmatpush1.bf16.msra.mxu0 0
    %1218 = vmatprep.subr.bf16.mxu0 0
    %1219 = vmatpush1.bf16.msra.mxu0 0
    %1220 = vmatprep.subr.bf16.mxu0 0
    %1221 = vmatpush1.bf16.msra.mxu0 0
    %1222 = vmatprep.subr.bf16.mxu0 0
    %1223 = vmatpush1.bf16.msra.mxu0 0
    %1224 = vmatprep.subr.bf16.mxu0 0
    %1225 = vmatpush1.bf16.msra.mxu0 0
    %1226 = vmatprep.subr.bf16.mxu0 0
    %1227 = vmatpush1.bf16.msra.mxu0 0
    %1228 = vmatprep.subr.bf16.mxu0 0
    %1229 = vmatpush1.bf16.msra.mxu0 0
    %1230 = vmatprep.subr.bf16.mxu0 0
    %1231 = vmatpush1.bf16.msra.mxu0 0
    %1232 = vmatprep.subr.bf16.mxu0 0
    %1233 = vmatpush1.bf16.msra.mxu0 0
    %1234 = vmatprep.subr.bf16.mxu0 0
    %1235 = vmatpush1.bf16.msra.mxu0 0
    %1236 = vmatprep.subr.bf16.mxu0 0
    %1237 = vmatpush1.bf16.msra.mxu0 0
    %1238 = vmatprep.subr.bf16.mxu0 0
    %1239 = vmatpush1.bf16.msra.mxu0 0
    %1240 = vmatprep.subr.bf16.mxu0 0
    %1241 = vmatpush1.bf16.msra.mxu0 0
    %1242 = vmatprep.mubr.bf16.mxu0 0
    %1243 = vmatmul.mubr.bf16.gmra.mrb[0].mxu0 %v1205
    %v1244 = vpop.f32.mrb[0].mxu0
    %v1245 = vadd.f32 0.0, %v1244
    %v1246 = vpop.f32.mrb[0].mxu0
    %v1247 = vpop.f32.mrb[0].mxu0
    %v1248 = vpop.f32.mrb[0].mxu0
    %1249 = vdwg.mxu0
    %v1250 = vpack.c.bf16 %v1245, %v1245
    %v1252 = vsel %vm177, %v1250, 0
    %1254 = vmatprep.subr.bf16.mxu0 0
    %1255 = vmatpush1.bf16.msra.mxu0 %v613
    %1256 = vmatprep.subr.bf16.mxu0 0
    %1257 = vmatpush1.bf16.msra.mxu0 0
    %1258 = vmatprep.subr.bf16.mxu0 0
    %1259 = vmatpush1.bf16.msra.mxu0 0
    %1260 = vmatprep.subr.bf16.mxu0 0
    %1261 = vmatpush1.bf16.msra.mxu0 0
    %1262 = vmatprep.subr.bf16.mxu0 0
    %1263 = vmatpush1.bf16.msra.mxu0 0
    %1264 = vmatprep.subr.bf16.mxu0 0
    %1265 = vmatpush1.bf16.msra.mxu0 0
    %1266 = vmatprep.subr.bf16.mxu0 0
    %1267 = vmatpush1.bf16.msra.mxu0 0
    %1268 = vmatprep.subr.bf16.mxu0 0
    %1269 = vmatpush1.bf16.msra.mxu0 0
    %1270 = vmatprep.subr.bf16.mxu0 0
    %1271 = vmatpush1.bf16.msra.mxu0 0
    %1272 = vmatprep.subr.bf16.mxu0 0
    %1273 = vmatpush1.bf16.msra.mxu0 0
    %1274 = vmatprep.subr.bf16.mxu0 0
    %1275 = vmatpush1.bf16.msra.mxu0 0
    %1276 = vmatprep.subr.bf16.mxu0 0
    %1277 = vmatpush1.bf16.msra.mxu0 0
    %1278 = vmatprep.subr.bf16.mxu0 0
    %1279 = vmatpush1.bf16.msra.mxu0 0
    %1280 = vmatprep.subr.bf16.mxu0 0
    %1281 = vmatpush1.bf16.msra.mxu0 0
    %1282 = vmatprep.subr.bf16.mxu0 0
    %1283 = vmatpush1.bf16.msra.mxu0 0
    %1284 = vmatprep.subr.bf16.mxu0 0
    %1285 = vmatpush1.bf16.msra.mxu0 0
    %1286 = vmatprep.mubr.bf16.mxu0 0
    %1287 = vmatmul.mubr.bf16.gmra.mrb[0].mxu0 %v1252
    %v1288 = vpop.f32.mrb[0].mxu0
    %v1289 = vadd.f32 0.0, %v1288
    %v1290 = vpop.f32.mrb[0].mxu0
    %v1291 = vpop.f32.mrb[0].mxu0
    %v1292 = vpop.f32.mrb[0].mxu0
    %1293 = vdwg.mxu0
    %v1294 = vadd.f32 %v1134, %v1289
    %1295 = vrot.lane.b32.xlu0 %v829, 80
    %v1296 = vpop.permute.xlu0 %1295
    %1297 = vrot.lane.b32.xlu0 %v829, 16
    %v1298 = vpop.permute.xlu0 %1297
    %v1300 = vsel %vm177, %v1296, 0
    %v1303 = vsel %vm177, %v1298, 0
    %1305 = vmatprep.subr.bf16.mxu0 0
    %1306 = vmatpush1.bf16.xpose.msra.mxu0 %v1303
    %1307 = vmatprep.subr.bf16.mxu0 0
    %1308 = vmatpush1.bf16.xpose.msra.mxu0 0
    %1309 = vmatprep.subr.bf16.mxu0 0
    %1310 = vmatpush1.bf16.xpose.msra.mxu0 0
    %1311 = vmatprep.subr.bf16.mxu0 0
    %1312 = vmatpush1.bf16.xpose.msra.mxu0 0
    %1313 = vmatprep.subr.bf16.mxu0 0
    %1314 = vmatpush1.bf16.xpose.msra.mxu0 0
    %1315 = vmatprep.subr.bf16.mxu0 0
    %1316 = vmatpush1.bf16.xpose.msra.mxu0 0
    %1317 = vmatprep.subr.bf16.mxu0 0
    %1318 = vmatpush1.bf16.xpose.msra.mxu0 0
    %1319 = vmatprep.subr.bf16.mxu0 0
    %1320 = vmatpush1.bf16.xpose.msra.mxu0 0
    %1321 = vmatprep.subr.bf16.mxu0 0
    %1322 = vmatpush1.bf16.xpose.msra.mxu0 0
    %1323 = vmatprep.subr.bf16.mxu0 0
    %1324 = vmatpush1.bf16.xpose.msra.mxu0 0
    %1325 = vmatprep.subr.bf16.mxu0 0
    %1326 = vmatpush1.bf16.xpose.msra.mxu0 0
    %1327 = vmatprep.subr.bf16.mxu0 0
    %1328 = vmatpush1.bf16.xpose.msra.mxu0 0
    %1329 = vmatprep.subr.bf16.mxu0 0
    %1330 = vmatpush1.bf16.xpose.msra.mxu0 0
    %1331 = vmatprep.subr.bf16.mxu0 0
    %1332 = vmatpush1.bf16.xpose.msra.mxu0 0
    %1333 = vmatprep.subr.bf16.mxu0 0
    %1334 = vmatpush1.bf16.xpose.msra.mxu0 0
    %1335 = vmatprep.subr.bf16.mxu0 0
    %1336 = vmatpush1.bf16.xpose.msra.mxu0 0
    %1337 = vmatprep.mubr.bf16.mxu0 0
    %1338 = vmatmul.mubr.bf16.gmra.mrb[0].mxu0 %v1300
    %v1339 = vpop.f32.mrb[0].mxu0
    %v1340 = vadd.f32 0.0, %v1339
    %v1341 = vpop.f32.mrb[0].mxu0
    %v1342 = vpop.f32.mrb[0].mxu0
    %v1343 = vpop.f32.mrb[0].mxu0
    %1344 = vdwg.mxu0
    %v1345 = vsel %vm171, %v1340, -1e+30
    %v1346 = vsel %vm225, %v1345, -inf
    %1347 = vmax.xlane.f32.xlu0 %v1346
    %v1348 = vpop.xlane.xlu0 %1347
    %v1349 = vsub.f32 %v1345, %v1348
    %v1350 = vmul.f32 %v1349, 1.442695
    %v1351 = vpow.pop %v1350
    %v1352 = vsel %vm225, %v1351, 0.0
    %1353 = vadd.xlane.f32.xlu0 %v1352
    %v1354 = vpop.xlane.xlu0 %1353
    %v1355 = vrcp.pop %v1354
    %v1356 = vmul.f32 %v1351, %v1355
    %v1357 = vpack.c.bf16 %v1356, %v1356
    %1358 = vrot.lane.b32.xlu0 %v830, 80
    %v1359 = vpop.permute.xlu0 %1358
    %v1361 = vsel %vm225, %v1357, 0
    %v1364 = vsel %vm241, %v1359, 0
    %1366 = vmatprep.subr.bf16.mxu0 0
    %1367 = vmatpush1.bf16.msra.mxu0 %v1364
    %1368 = vmatprep.subr.bf16.mxu0 0
    %1369 = vmatpush1.bf16.msra.mxu0 0
    %1370 = vmatprep.subr.bf16.mxu0 0
    %1371 = vmatpush1.bf16.msra.mxu0 0
    %1372 = vmatprep.subr.bf16.mxu0 0
    %1373 = vmatpush1.bf16.msra.mxu0 0
    %1374 = vmatprep.subr.bf16.mxu0 0
    %1375 = vmatpush1.bf16.msra.mxu0 0
    %1376 = vmatprep.subr.bf16.mxu0 0
    %1377 = vmatpush1.bf16.msra.mxu0 0
    %1378 = vmatprep.subr.bf16.mxu0 0
    %1379 = vmatpush1.bf16.msra.mxu0 0
    %1380 = vmatprep.subr.bf16.mxu0 0
    %1381 = vmatpush1.bf16.msra.mxu0 0
    %1382 = vmatprep.subr.bf16.mxu0 0
    %1383 = vmatpush1.bf16.msra.mxu0 0
    %1384 = vmatprep.subr.bf16.mxu0 0
    %1385 = vmatpush1.bf16.msra.mxu0 0
    %1386 = vmatprep.subr.bf16.mxu0 0
    %1387 = vmatpush1.bf16.msra.mxu0 0
    %1388 = vmatprep.subr.bf16.mxu0 0
    %1389 = vmatpush1.bf16.msra.mxu0 0
    %1390 = vmatprep.subr.bf16.mxu0 0
    %1391 = vmatpush1.bf16.msra.mxu0 0
    %1392 = vmatprep.subr.bf16.mxu0 0
    %1393 = vmatpush1.bf16.msra.mxu0 0
    %1394 = vmatprep.subr.bf16.mxu0 0
    %1395 = vmatpush1.bf16.msra.mxu0 0
    %1396 = vmatprep.subr.bf16.mxu0 0
    %1397 = vmatpush1.bf16.msra.mxu0 0
    %1398 = vmatprep.mubr.bf16.mxu0 0
    %1399 = vmatmul.mubr.bf16.gmra.mrb[0].mxu0 %v1361
    %v1400 = vpop.f32.mrb[0].mxu0
    %v1401 = vadd.f32 0.0, %v1400
    %v1402 = vpop.f32.mrb[0].mxu0
    %v1403 = vpop.f32.mrb[0].mxu0
    %v1404 = vpop.f32.mrb[0].mxu0
    %1405 = vdwg.mxu0
    %v1406 = vpack.c.bf16 %v1401, %v1401
    %v1408 = vsel %vm177, %v1406, 0
    %1410 = vmatprep.subr.bf16.mxu0 0
    %1411 = vmatpush1.bf16.msra.mxu0 %v775
    %1412 = vmatprep.subr.bf16.mxu0 0
    %1413 = vmatpush1.bf16.msra.mxu0 0
    %1414 = vmatprep.subr.bf16.mxu0 0
    %1415 = vmatpush1.bf16.msra.mxu0 0
    %1416 = vmatprep.subr.bf16.mxu0 0
    %1417 = vmatpush1.bf16.msra.mxu0 0
    %1418 = vmatprep.subr.bf16.mxu0 0
    %1419 = vmatpush1.bf16.msra.mxu0 0
    %1420 = vmatprep.subr.bf16.mxu0 0
    %1421 = vmatpush1.bf16.msra.mxu0 0
    %1422 = vmatprep.subr.bf16.mxu0 0
    %1423 = vmatpush1.bf16.msra.mxu0 0
    %1424 = vmatprep.subr.bf16.mxu0 0
    %1425 = vmatpush1.bf16.msra.mxu0 0
    %1426 = vmatprep.subr.bf16.mxu0 0
    %1427 = vmatpush1.bf16.msra.mxu0 0
    %1428 = vmatprep.subr.bf16.mxu0 0
    %1429 = vmatpush1.bf16.msra.mxu0 0
    %1430 = vmatprep.subr.bf16.mxu0 0
    %1431 = vmatpush1.bf16.msra.mxu0 0
    %1432 = vmatprep.subr.bf16.mxu0 0
    %1433 = vmatpush1.bf16.msra.mxu0 0
    %1434 = vmatprep.subr.bf16.mxu0 0
    %1435 = vmatpush1.bf16.msra.mxu0 0
    %1436 = vmatprep.subr.bf16.mxu0 0
    %1437 = vmatpush1.bf16.msra.mxu0 0
    %1438 = vmatprep.subr.bf16.mxu0 0
    %1439 = vmatpush1.bf16.msra.mxu0 0
    %1440 = vmatprep.subr.bf16.mxu0 0
    %1441 = vmatpush1.bf16.msra.mxu0 0
    %1442 = vmatprep.mubr.bf16.mxu0 0
    %1443 = vmatmul.mubr.bf16.gmra.mrb[0].mxu0 %v1408
    %v1444 = vpop.f32.mrb[0].mxu0
    %v1445 = vadd.f32 0.0, %v1444
    %v1446 = vpop.f32.mrb[0].mxu0
    %v1447 = vpop.f32.mrb[0].mxu0
    %v1448 = vpop.f32.mrb[0].mxu0
    %1449 = vdwg.mxu0
    %v1450 = vadd.f32 %v1294, %v1445
    %v1451 = vadd.f32 %v1450, %v825
    %1452 = vst.msk [vmem:[#allocation8 + $0x8] sm:$0xff] %vm111, %v1451
    // Predicated region
    $region30: #{tpu_custom_call.1} parent=1 // pred_check
      _
    $region31: #{tpu_custom_call.1} parent=1 // pred_check_branch
      %1454 = sbr.rel (0) target = $region33
    $region32: #{tpu_custom_call.1} parent=1 // pred_region
      %s1456 = ssub.s32 256, 256
      %1457 = vsyncadd [#allocation4], %s1456
      %s1458 = sshll.u32 [#allocation8], 4
      %s1459 = int_to_ptr.vmem [resolvable:$true] %s1458
      %1464 = dma.vmem_to_hbm [thread:$0]  %s1459, 256, %s4, [#allocation4], 128, 128, 8
    $region33: #{tpu_custom_call.1} parent=1 // pred_fallthru
      _
    // Predicated region
    $region34: #{tpu_custom_call.1} parent=1 // pred_check
      _
    $region35: #{tpu_custom_call.1} parent=1 // pred_check_branch
      %1466 = sbr.rel (0) target = $region37
    $region36: #{tpu_custom_call.1} parent=1 // pred_region
      %1467 = dma.done [#allocation4], 256
    $region37: #{tpu_custom_call.1} parent=1 // pred_fallthru
      _
    %1468 = vsyncpa [#allocation3], 1
    %1469 = vsyncpa [#allocation6], 1
    %1470 = vsyncpa [#allocation4], 1

</llo_original>
